<compile_context>
chip_gen: v6e
topology: v6e:2x2x1
jax: 0.10.0
libtpu: 0.0.40
codegen_flags: <defaults>
</compile_context>

<pallas_src>
import functools

import jax
import jax.numpy as jnp
from jax import lax
from jax.experimental import pallas as pl
from jax.experimental.pallas import tpu as pltpu


# --------------------------------------------------------------------------
# Kernel 1: fused 1x1-conv QK projection, one batch per step.
#   x_ref : (C, N)        w_ref : (2*inner, C)   (q-scale pre-folded)
#   q_ref / k_ref : (inner, N) bf16   (tokens lane-dense)
# --------------------------------------------------------------------------
def _qk_proj_kernel(x_ref, w_ref, q_ref, k_ref, *, inner):
    r = jnp.dot(w_ref[...], x_ref[...],
                preferred_element_type=jnp.float32)          # (2*inner, N)
    q_ref[...] = r[:inner].astype(q_ref.dtype)
    k_ref[...] = r[inner:].astype(k_ref.dtype)


# --------------------------------------------------------------------------
# Kernel 2: one fused score contraction + row softmax.
#   lhs_ref : (Kc, tq) bf16   rhs_ref : (Kc, N) bf16   o_ref : (tq, N)
#   sim[i, j] = sum_k lhs[k, i] * rhs[k, j]   (f32 accumulation on the MXU)
# --------------------------------------------------------------------------
def _attn_kernel(lhs_ref, rhs_ref, o_ref):
    sim = lax.dot_general(
        lhs_ref[...], rhs_ref[...],
        dimension_numbers=(((0,), (0,)), ((), ())),
        preferred_element_type=jnp.float32)                  # (tq, N) f32
    # Numerically stable softmax over the key (lane) axis, all f32.
    m = jnp.max(sim, axis=-1, keepdims=True)
    e = jnp.exp(sim - m)
    s = jnp.sum(e, axis=-1, keepdims=True)
    o_ref[...] = (e * pl.reciprocal(s, approx=True)).astype(o_ref.dtype)


@functools.partial(
    jax.jit,
    static_argnames=("heads", "dim_head", "max_pos_size",
                     "position_only", "position_and_content", "tq"))
def attention_forward(fmap, w_qk, rel_height_w, rel_width_w, *, heads, dim_head,
                      max_pos_size, position_only=False,
                      position_and_content=False, tq=128):
    """fmap: (B, C, H, W) f32.  Returns attn: (B, heads, H*W, H*W) f32."""
    B, C, H, W = fmap.shape
    inner = heads * dim_head
    N = H * W
    BH = B * heads
    scale = float(dim_head) ** (-0.5)

    # Free reshape: channels on sublanes, tokens (H*W) on lanes.
    x = fmap.reshape(B, C, N)
    # Fold the q scale into the first `inner` weight rows (exact: the
    # reference scales q before both content and positional scores).
    w = jnp.concatenate([w_qk[:inner] * scale, w_qk[inner:]], axis=0)

    # --- Kernel 1: QK projection (single 2*inner-row matmul) ---------------
    q, k = pl.pallas_call(
        functools.partial(_qk_proj_kernel, inner=inner),
        out_shape=(jax.ShapeDtypeStruct((B, inner, N), jnp.bfloat16),
                   jax.ShapeDtypeStruct((B, inner, N), jnp.bfloat16)),
        grid_spec=pltpu.PrefetchScalarGridSpec(
            num_scalar_prefetch=0,
            grid=(B,),
            in_specs=[
                pl.BlockSpec((None, C, N), lambda b: (b, 0, 0)),     # x (per b)
                pl.BlockSpec((2 * inner, C), lambda b: (0, 0)),      # W (full)
            ],
            out_specs=(
                pl.BlockSpec((None, inner, N), lambda b: (b, 0, 0)),
                pl.BlockSpec((None, inner, N), lambda b: (b, 0, 0)),
            )),
        compiler_params=pltpu.CompilerParams(
            dimension_semantics=("parallel",)),
    )(x, w)

    # Leading-axis reshapes only (free, no HBM relayout).
    q_bh = q.reshape(BH, dim_head, N)
    k_bh = k.reshape(BH, dim_head, N)

    use_pos = bool(position_only or position_and_content)
    use_content = not position_only

    lhs_parts = []
    rhs_parts = []
    if use_content:
        lhs_parts.append(q_bh)
        rhs_parts.append(k_bh)
    if use_pos:
        # RelPosEmb: embedding gather + tiny per-axis score einsums (JAX).
        ar = jnp.arange(max_pos_size)
        rel_ind = (ar[None, :] - ar[:, None]) + max_pos_size - 1
        e_h = rel_height_w[rel_ind[:H, :H]]            # (H, H, d) f32
        e_w = rel_width_w[rel_ind[:W, :W]]             # (W, W, d) f32
        q5 = q.reshape(B, heads, dim_head, H, W)       # free split of N
        hpos = jnp.einsum('bhdxy,xud->bhuxy', q5, e_h,
                          preferred_element_type=jnp.float32)
        wpos = jnp.einsum('bhdxy,yvd->bhvxy', q5, e_w,
                          preferred_element_type=jnp.float32)
        lhs_parts.append(hpos.reshape(BH, H, N).astype(jnp.bfloat16))
        lhs_parts.append(wpos.reshape(BH, W, N).astype(jnp.bfloat16))
        # 0/1 expansion rows (exact in bf16): pos[i, u*W+v] = hpos[u,i]+wpos[v,i].
        cols = jnp.arange(N)
        r_h = (cols[None, :] // W == jnp.arange(H)[:, None]).astype(jnp.bfloat16)
        r_w = (cols[None, :] % W == jnp.arange(W)[:, None]).astype(jnp.bfloat16)
        rhw = jnp.concatenate([r_h, r_w], axis=0)                    # (H+W, N)
        rhs_parts.append(jnp.broadcast_to(rhw[None], (BH, H + W, N)))

    lhs = lhs_parts[0] if len(lhs_parts) == 1 else jnp.concatenate(lhs_parts, axis=1)
    rhs = rhs_parts[0] if len(rhs_parts) == 1 else jnp.concatenate(rhs_parts, axis=1)
    Kc = lhs.shape[1]   # 64 (content), 32 (pos only), 96 (pos + content)

    # Query-tile size: lane/sublane friendly; (tq, N) f32 slab stays well
    # under the vreg file at tq=128.
    tq = tq if (0 < tq <= N and N % tq == 0) else N
    grid = (BH, N // tq)

    attn = pl.pallas_call(
        _attn_kernel,
        out_shape=jax.ShapeDtypeStruct((BH, N, N), fmap.dtype),
        grid_spec=pltpu.PrefetchScalarGridSpec(
            num_scalar_prefetch=0,
            grid=grid,
            in_specs=[
                pl.BlockSpec((None, Kc, tq), lambda i, j: (i, 0, j)),  # lhs tile
                pl.BlockSpec((None, Kc, N), lambda i, j: (i, 0, 0)),   # rhs full
            ],
            out_specs=pl.BlockSpec((None, tq, N), lambda i, j: (i, j, 0)),
        ),
        compiler_params=pltpu.CompilerParams(
            dimension_semantics=("parallel", "parallel")),
    )(lhs, rhs)

    return attn.reshape(B, heads, N, N)


# --------------------------------------------------------------------------
# Pure-JAX reference mirroring the PyTorch module (for correctness check).
# --------------------------------------------------------------------------
def _reference(fmap, w_qk, rel_h, rel_w, *, heads, dim_head, max_pos_size,
               position_only, position_and_content):
    B, C, H, W = fmap.shape
    inner = heads * dim_head
    scale = float(dim_head) ** (-0.5)

    qk = jnp.einsum('oc,bcxy->boxy', w_qk, fmap)
    q, k = qk[:, :inner], qk[:, inner:]
    # 'b (h d) x y -> b h x y d'
    q = q.reshape(B, heads, dim_head, H, W).transpose(0, 1, 3, 4, 2)
    k = k.reshape(B, heads, dim_head, H, W).transpose(0, 1, 3, 4, 2)
    q = q * scale

    ar = jnp.arange(max_pos_size)
    rel_ind = (ar[None, :] - ar[:, None]) + max_pos_size - 1
    height_emb = rel_h[rel_ind[:H, :H]][:, :, None, :]   # (H, H, 1, d)
    width_emb = rel_w[rel_ind[:W, :W]][:, None, :, :]    # (W, 1, W, d)
    height_score = jnp.einsum('bhxyd,xuvd->bhxyuv', q, height_emb)
    width_score = jnp.einsum('bhxyd,yuvd->bhxyuv', q, width_emb)
    sim_pos = height_score + width_score

    if position_only:
        sim = sim_pos
    elif position_and_content:
        sim = jnp.einsum('bhxyd,bhuvd->bhxyuv', q, k) + sim_pos
    else:
        sim = jnp.einsum('bhxyd,bhuvd->bhxyuv', q, k)

    sim = sim.reshape(B, heads, H * W, H * W)
    return jax.nn.softmax(sim, axis=-1)


if __name__ == "__main__":
    # Small shapes consistent with the module (constructor-parameterizable).
    B, C, H, W = 2, 32, 16, 16
    heads, dim_head, max_pos_size = 2, 64, 16
    inner = heads * dim_head

    key = jax.random.PRNGKey(0)
    kx, kw, kh, kv = jax.random.split(key, 4)

    fmap = jax.random.normal(kx, (B, C, H, W), dtype=jnp.float32)
    # Conv2d(dim, 2*inner, 1, bias=False) weight, squeezed to (2*inner, C).
    bound = 1.0 / (C ** 0.5)
    w_qk = jax.random.uniform(kw, (2 * inner, C), jnp.float32, -bound, bound)
    # nn.Embedding tables: N(0, 1) init.
    rel_height_w = jax.random.normal(kh, (2 * max_pos_size - 1, dim_head), jnp.float32)
    rel_width_w = jax.random.normal(kv, (2 * max_pos_size - 1, dim_head), jnp.float32)

    # Exercise all three branches: content-only (default), position_only,
    # position_and_content.  Tolerances account for bf16 MXU operands and the
    # EUP approx-reciprocal normalize (softmax reductions stay f32).
    for mode in ("content_only", "position_only", "position_and_content"):
        po = (mode == "position_only")
        pc = (mode == "position_and_content")
        out = attention_forward(fmap, w_qk, rel_height_w, rel_width_w,
                                heads=heads, dim_head=dim_head,
                                max_pos_size=max_pos_size,
                                position_only=po, position_and_content=pc)
        out = jax.block_until_ready(out)
        ref = _reference(fmap, w_qk, rel_height_w, rel_width_w,
                         heads=heads, dim_head=dim_head,
                         max_pos_size=max_pos_size,
                         position_only=po, position_and_content=pc)
        assert out.shape == (B, heads, H * W, H * W)
        assert jnp.allclose(out, ref, atol=5e-3, rtol=5e-2), f"mismatch: {mode}"

    print("KERNEL_OK")
</pallas_src>

<mosaic_0001>
module attributes {stable_mosaic.version = 11 : i64} {
  func.func @_qk_proj_kernel(%arg0: i32, %arg1: memref<1x32x256xf32, #tpu.memory_space<vmem>>, %arg2: memref<256x32xf32, #tpu.memory_space<vmem>>, %arg3: memref<1x128x256xbf16, #tpu.memory_space<vmem>>, %arg4: memref<1x128x256xbf16, #tpu.memory_space<vmem>>) attributes {dimension_semantics = [#tpu.dimension_semantics<parallel>], iteration_bounds = array<i64: 2>, scalar_prefetch = 0 : i64, scratch_operands = 0 : i64, tpu.core_type = #tpu.core_type<tc>, window_params = [{transform_indices = @transform_0, window_bounds = array<i64: 1, 32, 256>}, {pipeline_mode = #tpu.pipeline_mode<synchronous>, transform_indices = @transform_1, window_bounds = array<i64: 256, 32>}, {transform_indices = @transform_2, window_bounds = array<i64: 1, 128, 256>}, {transform_indices = @transform_3, window_bounds = array<i64: 1, 128, 256>}]} {
    %c0 = arith.constant 0 : index
    %c0_0 = arith.constant 0 : index
    %0 = vector.load %arg2[%c0, %c0_0] : memref<256x32xf32, #tpu.memory_space<vmem>>, vector<256x32xf32>
    %c0_1 = arith.constant 0 : index
    %c0_2 = arith.constant 0 : index
    %c0_3 = arith.constant 0 : index
    %1 = vector.load %arg1[%c0_1, %c0_2, %c0_3] : memref<1x32x256xf32, #tpu.memory_space<vmem>>, vector<1x32x256xf32>
    %2 = vector.shape_cast %1 : vector<1x32x256xf32> to vector<32x256xf32>
    %cst = arith.constant dense<0.000000e+00> : vector<256x256xf32>
    %3 = tpu.matmul %0, %2, %cst {dimension_numbers = #tpu.dot_dimension_numbers<[1], [0], [0], [1], [0, 0, 1, 1], [], []>} : vector<256x32xf32>, vector<32x256xf32>, vector<256x256xf32> -> vector<256x256xf32>
    %4 = vector.extract_strided_slice %3 {offsets = [0, 0], sizes = [128, 256], strides = [1, 1]} : vector<256x256xf32> to vector<128x256xf32>
    %5 = arith.truncf %4 : vector<128x256xf32> to vector<128x256xbf16>
    %c0_4 = arith.constant 0 : index
    %c0_5 = arith.constant 0 : index
    %c0_6 = arith.constant 0 : index
    %6 = vector.load %arg3[%c0_4, %c0_5, %c0_6] : memref<1x128x256xbf16, #tpu.memory_space<vmem>>, vector<1x128x256xbf16>
    %7 = vector.shape_cast %6 : vector<1x128x256xbf16> to vector<128x256xbf16>
    %8 = vector.shape_cast %5 : vector<128x256xbf16> to vector<1x128x256xbf16>
    tpu.vector_store %arg3[%c0_4, %c0_5, %c0_6], %8 {strides = array<i32>} : memref<1x128x256xbf16, #tpu.memory_space<vmem>>, vector<1x128x256xbf16>,
    %9 = vector.extract_strided_slice %3 {offsets = [128, 0], sizes = [128, 256], strides = [1, 1]} : vector<256x256xf32> to vector<128x256xf32>
    %10 = arith.truncf %9 : vector<128x256xf32> to vector<128x256xbf16>
    %c0_7 = arith.constant 0 : index
    %c0_8 = arith.constant 0 : index
    %c0_9 = arith.constant 0 : index
    %11 = vector.load %arg4[%c0_7, %c0_8, %c0_9] : memref<1x128x256xbf16, #tpu.memory_space<vmem>>, vector<1x128x256xbf16>
    %12 = vector.shape_cast %11 : vector<1x128x256xbf16> to vector<128x256xbf16>
    %13 = vector.shape_cast %10 : vector<128x256xbf16> to vector<1x128x256xbf16>
    tpu.vector_store %arg4[%c0_7, %c0_8, %c0_9], %13 {strides = array<i32>} : memref<1x128x256xbf16, #tpu.memory_space<vmem>>, vector<1x128x256xbf16>,
    return
  }
  func.func @transform_0(%arg0: i32) -> (i32, i32, i32) {
    %c0_i32 = arith.constant 0 : i32
    %c0_i32_0 = arith.constant 0 : i32
    %c0_i32_1 = arith.constant 0 : i32
    return %arg0, %c0_i32, %c0_i32_0 : i32, i32, i32
  }
  func.func @transform_1(%arg0: i32) -> (i32, i32) {
    %c0_i32 = arith.constant 0 : i32
    %c0_i32_0 = arith.constant 0 : i32
    %c0_i32_1 = arith.constant 0 : i32
    return %c0_i32, %c0_i32_0 : i32, i32
  }
  func.func @transform_2(%arg0: i32) -> (i32, i32, i32) {
    %c0_i32 = arith.constant 0 : i32
    %c0_i32_0 = arith.constant 0 : i32
    %c0_i32_1 = arith.constant 0 : i32
    return %arg0, %c0_i32, %c0_i32_0 : i32, i32, i32
  }
  func.func @transform_3(%arg0: i32) -> (i32, i32, i32) {
    %c0_i32 = arith.constant 0 : i32
    %c0_i32_0 = arith.constant 0 : i32
    %c0_i32_1 = arith.constant 0 : i32
    return %arg0, %c0_i32, %c0_i32_0 : i32, i32, i32
  }
}

module attributes {stable_mosaic.version = 11 : i64} {
  func.func @_attn_kernel(%arg0: i32, %arg1: i32, %arg2: memref<1x64x128xbf16, #tpu.memory_space<vmem>>, %arg3: memref<1x64x256xbf16, #tpu.memory_space<vmem>>, %arg4: memref<1x128x256xf32, #tpu.memory_space<vmem>>) attributes {dimension_semantics = [#tpu.dimension_semantics<parallel>, #tpu.dimension_semantics<parallel>], iteration_bounds = array<i64: 4, 2>, scalar_prefetch = 0 : i64, scratch_operands = 0 : i64, tpu.core_type = #tpu.core_type<tc>, window_params = [{transform_indices = @transform_0, window_bounds = array<i64: 1, 64, 128>}, {transform_indices = @transform_1, window_bounds = array<i64: 1, 64, 256>}, {transform_indices = @transform_2, window_bounds = array<i64: 1, 128, 256>}]} {
    %c0 = arith.constant 0 : index
    %c0_0 = arith.constant 0 : index
    %c0_1 = arith.constant 0 : index
    %0 = vector.load %arg2[%c0, %c0_0, %c0_1] : memref<1x64x128xbf16, #tpu.memory_space<vmem>>, vector<1x64x128xbf16>
    %1 = vector.shape_cast %0 : vector<1x64x128xbf16> to vector<64x128xbf16>
    %c0_2 = arith.constant 0 : index
    %c0_3 = arith.constant 0 : index
    %c0_4 = arith.constant 0 : index
    %2 = vector.load %arg3[%c0_2, %c0_3, %c0_4] : memref<1x64x256xbf16, #tpu.memory_space<vmem>>, vector<1x64x256xbf16>
    %3 = vector.shape_cast %2 : vector<1x64x256xbf16> to vector<64x256xbf16>
    %cst = arith.constant dense<0.000000e+00> : vector<128x256xf32>
    %4 = tpu.matmul %1, %3, %cst {dimension_numbers = #tpu.dot_dimension_numbers<[0], [0], [1], [1], [0, 1, 1, 1], [], []>} : vector<64x128xbf16>, vector<64x256xbf16>, vector<128x256xf32> -> vector<128x256xf32>
    %cst_5 = arith.constant dense<0xFF800000> : vector<128xf32>
    %5 = vector.multi_reduction <maximumf>, %4, %cst_5 [1] : vector<128x256xf32> to vector<128xf32>
    %6 = vector.shape_cast %5 : vector<128xf32> to vector<128x1xf32>
    %7 = vector.broadcast %6 : vector<128x1xf32> to vector<128x256xf32>
    %8 = arith.subf %4, %7 : vector<128x256xf32>
    %9 = math.exp %8 : vector<128x256xf32>
    %cst_6 = arith.constant dense<0.000000e+00> : vector<128xf32>
    %10 = vector.multi_reduction <add>, %9, %cst_6 [1] : vector<128x256xf32> to vector<128xf32>
    %11 = vector.shape_cast %10 : vector<128xf32> to vector<128x1xf32>
    %12 = tpu.reciprocal %11 {approx = true} : vector<128x1xf32> -> vector<128x1xf32>
    %13 = vector.broadcast %12 : vector<128x1xf32> to vector<128x256xf32>
    %14 = arith.mulf %9, %13 : vector<128x256xf32>
    %c0_7 = arith.constant 0 : index
    %c0_8 = arith.constant 0 : index
    %c0_9 = arith.constant 0 : index
    %15 = vector.load %arg4[%c0_7, %c0_8, %c0_9] : memref<1x128x256xf32, #tpu.memory_space<vmem>>, vector<1x128x256xf32>
    %16 = vector.shape_cast %15 : vector<1x128x256xf32> to vector<128x256xf32>
    %17 = vector.shape_cast %14 : vector<128x256xf32> to vector<1x128x256xf32>
    tpu.vector_store %arg4[%c0_7, %c0_8, %c0_9], %17 {strides = array<i32>} : memref<1x128x256xf32, #tpu.memory_space<vmem>>, vector<1x128x256xf32>,
    return
  }
  func.func @transform_0(%arg0: i32, %arg1: i32) -> (i32, i32, i32) {
    %c0_i32 = arith.constant 0 : i32
    %c0_i32_0 = arith.constant 0 : i32
    return %arg0, %c0_i32, %arg1 : i32, i32, i32
  }
  func.func @transform_1(%arg0: i32, %arg1: i32) -> (i32, i32, i32) {
    %c0_i32 = arith.constant 0 : i32
    %c0_i32_0 = arith.constant 0 : i32
    %c0_i32_1 = arith.constant 0 : i32
    return %arg0, %c0_i32, %c0_i32_0 : i32, i32, i32
  }
  func.func @transform_2(%arg0: i32, %arg1: i32) -> (i32, i32, i32) {
    %c0_i32 = arith.constant 0 : i32
    %c0_i32_0 = arith.constant 0 : i32
    return %arg0, %arg1, %c0_i32 : i32, i32, i32
  }
}

</mosaic_0001>

<llo_original>
// kernel: attention_forward.2
$region0: #{attention_forward.2}
  #allocation0 [shape = 'u32[]', space=smem, size = 0x4, offset = 0x4, fixed_abs, tag = 'smem constant byte address 0x4 - core index']
  #allocation1 [shape = 'u32[144,128]{1,0:T(1,128)}', space=vmem, size = 0x12000, scoped, tag = 'internal scratch']
  %s0 = inlined_call_operand.vmem [shape: f32[2,32,256], index: 0, kind: input, shape index: {}]
  %s1 = inlined_call_operand.vmem [shape: f32[256,32], index: 1, kind: input, shape index: {}]
  %s2 = inlined_call_operand.vmem [shape: bf16[2,128,256], index: 2, kind: output, shape index: {0}]
  %s3 = inlined_call_operand.vmem [shape: bf16[2,128,256], index: 3, kind: output, shape index: {1}]
  %4 = xla_tuple %s2, %s3
  %s5 = sld [smem:[#allocation0]]
  $region49: #{attention_forward.2} parent=0
    _
  %s7 = ssub.s32 1, %s5
  %s8 = scalar_select 0, %s7, %s5
  loop: start=0, step=1, limit=4
  $region2: #{attention_forward.2} parent=0 // loop_pre_header
    _
  $region3: #{attention_forward.2} parent=0 // loop_header
    %s10 = sphi 0, %s14
    %p11 = scmp.ge.s32.totalorder %s10, 4
    %s20 = sphi 0, %s22
    %s23 = sphi 0, %s20
    %s24 = sphi 0, %s23
    %s40 = sphi 0, %s24
    %s44 = sphi 0, %s44
    %s46 = sphi 0, %s44
    %s47 = sphi 0, %s46
    %s61 = sphi 0, %s47
    %s67 = sphi 0, %s69
    %s70 = sphi 0, %s67
    %s71 = sphi 0, %s70
    %s87 = sphi 0, %s71
    %s93 = sphi 0, %s95
    %s96 = sphi 0, %s93
    %s97 = sphi 0, %s96
    %s113 = sphi 0, %s97
  $region4: #{attention_forward.2} parent=0 // loop_header_branch
    %13 = sbr.rel (%p11) target = $region8
  $region5: #{attention_forward.2} parent=0 // loop_body
    %s15 = ssub.s32 %s10, 1
    %s16 = ssub.s32 %s10, 2
    %s17 = sadd.s32 %s10, 1
    %s18 = ssub.s32 %s10, %s17
    %p19 = scmp.eq.s32.totalorder %s18, 0
    %s21 = sadd.s32 %s20, 1
    %s22 = scalar_select %p19, %s20, %s21
    %p25 = pneg %p19
    %p26 = scmp.eq.s32.totalorder %s10, 1
    %p27 = por %p25, %p26
    %p28 = scmp.ne.s32.totalorder %s20, %s23
    %p29 = scmp.eq.s32.totalorder %s10, 0
    %p30 = por %p28, %p29
    %p31 = scmp.ne.s32.totalorder %s20, %s23
    %p32 = scmp.eq.s32.totalorder %s15, 1
    %p33 = por %p31, %p32
    %p34 = scmp.ne.s32.totalorder %s23, %s24
    %p35 = scmp.eq.s32.totalorder %s15, 0
    %p36 = por %p34, %p35
    %p37 = scmp.ne.s32.totalorder %s23, %s24
    %p38 = scmp.eq.s32.totalorder %s16, 1
    %p39 = por %p37, %p38
    %p41 = scmp.ne.s32.totalorder %s24, %s40
    %p42 = scmp.eq.s32.totalorder %s16, 0
    %p43 = por %p41, %p42
    %s45 = sadd.s32 %s44, 1
    %p48 = scmp.eq.s32.totalorder %s10, 1
    %p49 = scmp.ne.s32.totalorder %s44, %s46
    %p50 = scmp.eq.s32.totalorder %s10, 0
    %p51 = por %p49, %p50
    %p52 = scmp.ne.s32.totalorder %s44, %s46
    %p53 = scmp.eq.s32.totalorder %s15, 1
    %p54 = por %p52, %p53
    %p55 = scmp.ne.s32.totalorder %s46, %s47
    %p56 = scmp.eq.s32.totalorder %s15, 0
    %p57 = por %p55, %p56
    %p58 = scmp.ne.s32.totalorder %s46, %s47
    %p59 = scmp.eq.s32.totalorder %s16, 1
    %p60 = por %p58, %p59
    %p62 = scmp.ne.s32.totalorder %s47, %s61
    %p63 = scmp.eq.s32.totalorder %s16, 0
    %p64 = por %p62, %p63
    %s65 = ssub.s32 %s10, %s17
    %p66 = scmp.eq.s32.totalorder %s65, 0
    %s68 = sadd.s32 %s67, 1
    %s69 = scalar_select %p66, %s67, %s68
    %p72 = pneg %p66
    %p73 = scmp.eq.s32.totalorder %s10, 1
    %p74 = por %p72, %p73
    %p75 = scmp.ne.s32.totalorder %s67, %s70
    %p76 = scmp.eq.s32.totalorder %s10, 0
    %p77 = por %p75, %p76
    %p78 = scmp.ne.s32.totalorder %s67, %s70
    %p79 = scmp.eq.s32.totalorder %s15, 1
    %p80 = por %p78, %p79
    %p81 = scmp.ne.s32.totalorder %s70, %s71
    %p82 = scmp.eq.s32.totalorder %s15, 0
    %p83 = por %p81, %p82
    %p84 = scmp.ne.s32.totalorder %s70, %s71
    %p85 = scmp.eq.s32.totalorder %s16, 1
    %p86 = por %p84, %p85
    %p88 = scmp.ne.s32.totalorder %s71, %s87
    %p89 = scmp.eq.s32.totalorder %s16, 0
    %p90 = por %p88, %p89
    %s91 = ssub.s32 %s10, %s17
    %p92 = scmp.eq.s32.totalorder %s91, 0
    %s94 = sadd.s32 %s93, 1
    %s95 = scalar_select %p92, %s93, %s94
    %p98 = pneg %p92
    %p99 = scmp.eq.s32.totalorder %s10, 1
    %p100 = por %p98, %p99
    %p101 = scmp.ne.s32.totalorder %s93, %s96
    %p102 = scmp.eq.s32.totalorder %s10, 0
    %p103 = por %p101, %p102
    %p104 = scmp.ne.s32.totalorder %s93, %s96
    %p105 = scmp.eq.s32.totalorder %s15, 1
    %p106 = por %p104, %p105
    %p107 = scmp.ne.s32.totalorder %s96, %s97
    %p108 = scmp.eq.s32.totalorder %s15, 0
    %p109 = por %p107, %p108
    %p110 = scmp.ne.s32.totalorder %s96, %s97
    %p111 = scmp.eq.s32.totalorder %s16, 1
    %p112 = por %p110, %p111
    %p114 = scmp.ne.s32.totalorder %s97, %s113
    %p115 = scmp.eq.s32.totalorder %s16, 0
    %p116 = por %p114, %p115
    %p117 = scmp.le.s32.totalorder 1, %s10
    %p118 = scmp.lt.s32.totalorder %s10, 3
    %p119 = pnand %p117, %p118
    %p120 = pneg %p119
    // Predicated region
    $region9: #{attention_forward.2} parent=5 // pred_check
      _
    $region10: #{attention_forward.2} parent=5 // pred_check_branch
      %122 = sbr.rel (%p119) target = $region12
    $region11: #{attention_forward.2} parent=5 // pred_region
      %s123 = ssub.s32 %s10, 1
      // Predicated region
      $region13: #{attention_forward.2} parent=11 // pred_check
        %p124 = pneg %p57
      $region14: #{attention_forward.2} parent=11 // pred_check_branch
        %126 = sbr.rel (%p124) target = $region16
      $region15: #{attention_forward.2} parent=11 // pred_region
        _
      $region16: #{attention_forward.2} parent=11 // pred_fallthru
        _
    $region12: #{attention_forward.2} parent=5 // pred_fallthru
      _
    %p127 = scmp.lt.s32.totalorder %s10, 2
    // Predicated region
    $region17: #{attention_forward.2} parent=5 // pred_check
      %p128 = pneg %p127
    $region18: #{attention_forward.2} parent=5 // pred_check_branch
      %130 = sbr.rel (%p128) target = $region20
    $region19: #{attention_forward.2} parent=5 // pred_region
      // Predicated region
      $region21: #{attention_forward.2} parent=19 // pred_check
        %p131 = pneg %p30
      $region22: #{attention_forward.2} parent=19 // pred_check_branch
        %133 = sbr.rel (%p131) target = $region24
      $region23: #{attention_forward.2} parent=19 // pred_region
        %p134 = scmp.lt.s32.totalorder %s10, 1
        %s135 = scalar_select %p134, %s10, 1
        %s136 = smul.addr %s135, 8
        %s137 = smul.addr %s136, 8
        %s138 = scalar_lea.vmem %s0, %s137
      $region24: #{attention_forward.2} parent=19 // pred_fallthru
        _
    $region20: #{attention_forward.2} parent=5 // pred_fallthru
      _
    %p139 = scmp.le.s32.totalorder 1, %s10
    %p140 = scmp.lt.s32.totalorder %s10, 3
    %p141 = pnand %p139, %p140
    %p142 = pneg %p141
    // Predicated region
    $region25: #{attention_forward.2} parent=5 // pred_check
      _
    $region26: #{attention_forward.2} parent=5 // pred_check_branch
      %144 = sbr.rel (%p141) target = $region28
    $region27: #{attention_forward.2} parent=5 // pred_region
      %s145 = ssub.s32 %s10, 1
      %p146 = scmp.lt.s32.totalorder %s15, 1
      %s147 = scalar_select %p146, %s15, 1
      %s148 = smul.addr %s147, 8
      %s149 = smul.addr %s148, 8
      %s150 = scalar_lea.vmem %s0, %s149
      %p151 = pneg %p36
      %p152 = pneg %p33
      %p153 = pneg %p57
      %p154 = pneg %p54
      %p155 = pneg %p83
      %p156 = pneg %p80
      %p157 = scmp.lt.s32.totalorder %s15, 1
      %s158 = scalar_select %p157, %s15, 1
      %s159 = smul.addr %s158, 32
      %s160 = smul.addr %s159, 4
      %s161 = scalar_lea.vmem %s2, %s160
      %p162 = pneg %p109
      %p163 = pneg %p106
      %p164 = scmp.lt.s32.totalorder %s15, 1
      %s165 = scalar_select %p164, %s15, 1
      %s166 = smul.addr %s165, 32
      %s167 = smul.addr %s166, 4
      %s168 = scalar_lea.vmem %s3, %s167
      %p169 = scmp.lt.s32.totalorder %s15, 1
      %s170 = scalar_select %p169, %s15, 1
      %s171 = smul.addr %s170, 8
      %s172 = smul.addr %s171, 8
      %s173 = scalar_lea.vmem %s0, %s172
      %p174 = scmp.lt.s32.totalorder %s15, 1
      %s175 = scalar_select %p174, %s15, 1
      %s176 = smul.addr %s175, 32
      %s177 = smul.addr %s176, 4
      %s178 = scalar_lea.vmem %s2, %s177
      %p179 = scmp.lt.s32.totalorder %s15, 1
      %s180 = scalar_select %p179, %s15, 1
      %s181 = smul.addr %s180, 32
      %s182 = smul.addr %s181, 4
      %s183 = scalar_lea.vmem %s3, %s182
      %v184 = vld [vmem:[%s1] sm:$0xff]
      %v185 = vld [vmem:[%s1 + $0x8] sm:$0xff]
      %v186 = vld [vmem:[%s1 + $0x10] sm:$0xff]
      %v187 = vld [vmem:[%s1 + $0x18] sm:$0xff]
      %v188 = vld [vmem:[%s1 + $0x20] sm:$0xff]
      %v189 = vld [vmem:[%s1 + $0x28] sm:$0xff]
      %v190 = vld [vmem:[%s1 + $0x30] sm:$0xff]
      %v191 = vld [vmem:[%s1 + $0x38] sm:$0xff]
      %v192 = vld [vmem:[%s1 + $0x40] sm:$0xff]
      %v193 = vld [vmem:[%s1 + $0x48] sm:$0xff]
      %v194 = vld [vmem:[%s1 + $0x50] sm:$0xff]
      %v195 = vld [vmem:[%s1 + $0x58] sm:$0xff]
      %v196 = vld [vmem:[%s1 + $0x60] sm:$0xff]
      %v197 = vld [vmem:[%s1 + $0x68] sm:$0xff]
      %v198 = vld [vmem:[%s1 + $0x70] sm:$0xff]
      %v199 = vld [vmem:[%s1 + $0x78] sm:$0xff]
      %v200 = vld [vmem:[%s1 + $0x80] sm:$0xff]
      %v201 = vld [vmem:[%s1 + $0x88] sm:$0xff]
      %v202 = vld [vmem:[%s1 + $0x90] sm:$0xff]
      %v203 = vld [vmem:[%s1 + $0x98] sm:$0xff]
      %v204 = vld [vmem:[%s1 + $0xa0] sm:$0xff]
      %v205 = vld [vmem:[%s1 + $0xa8] sm:$0xff]
      %v206 = vld [vmem:[%s1 + $0xb0] sm:$0xff]
      %v207 = vld [vmem:[%s1 + $0xb8] sm:$0xff]
      %v208 = vld [vmem:[%s1 + $0xc0] sm:$0xff]
      %v209 = vld [vmem:[%s1 + $0xc8] sm:$0xff]
      %v210 = vld [vmem:[%s1 + $0xd0] sm:$0xff]
      %v211 = vld [vmem:[%s1 + $0xd8] sm:$0xff]
      %v212 = vld [vmem:[%s1 + $0xe0] sm:$0xff]
      %v213 = vld [vmem:[%s1 + $0xe8] sm:$0xff]
      %v214 = vld [vmem:[%s1 + $0xf0] sm:$0xff]
      %v215 = vld [vmem:[%s1 + $0xf8] sm:$0xff]
      %v216 = vld [vmem:[%s173] sm:$0xff]
      %v217 = vld [vmem:[%s173 + $0x8] sm:$0xff]
      %v218 = vld [vmem:[%s173 + $0x10] sm:$0xff]
      %v219 = vld [vmem:[%s173 + $0x18] sm:$0xff]
      %v220 = vld [vmem:[%s173 + $0x20] sm:$0xff]
      %v221 = vld [vmem:[%s173 + $0x28] sm:$0xff]
      %v222 = vld [vmem:[%s173 + $0x30] sm:$0xff]
      %v223 = vld [vmem:[%s173 + $0x38] sm:$0xff]
      %vm224 = vcmask 261120
      %v226 = vsel %vm224, %v184, 0
      %v229 = vsel %vm224, %v185, 0
      %v232 = vsel %vm224, %v186, 0
      %v235 = vsel %vm224, %v187, 0
      %v238 = vsel %vm224, %v188, 0
      %v241 = vsel %vm224, %v189, 0
      %v244 = vsel %vm224, %v190, 0
      %v247 = vsel %vm224, %v191, 0
      %v250 = vsel %vm224, %v192, 0
      %v253 = vsel %vm224, %v193, 0
      %v256 = vsel %vm224, %v194, 0
      %v259 = vsel %vm224, %v195, 0
      %v262 = vsel %vm224, %v196, 0
      %v265 = vsel %vm224, %v197, 0
      %v268 = vsel %vm224, %v198, 0
      %v271 = vsel %vm224, %v199, 0
      %v274 = vsel %vm224, %v200, 0
      %v277 = vsel %vm224, %v201, 0
      %v280 = vsel %vm224, %v202, 0
      %v283 = vsel %vm224, %v203, 0
      %v286 = vsel %vm224, %v204, 0
      %v289 = vsel %vm224, %v205, 0
      %v292 = vsel %vm224, %v206, 0
      %v295 = vsel %vm224, %v207, 0
      %v298 = vsel %vm224, %v208, 0
      %v301 = vsel %vm224, %v209, 0
      %v304 = vsel %vm224, %v210, 0
      %v307 = vsel %vm224, %v211, 0
      %v310 = vsel %vm224, %v212, 0
      %v313 = vsel %vm224, %v213, 0
      %v316 = vsel %vm224, %v214, 0
      %v319 = vsel %vm224, %v215, 0
      %321 = vmatprep.subr.mxu0 0.0
      %322 = vmatpush1.msra.mxu0 0.0
      %323 = vmatprep.subr.mxu0 0.0
      %324 = vmatpush1.msra.mxu0 0.0
      %325 = vmatprep.subr.mxu0 0.0
      %326 = vmatpush1.msra.mxu0 0.0
      %327 = vmatprep.subr.mxu0 0.0
      %328 = vmatpush1.msra.mxu0 0.0
      %329 = vmatprep.subr.mxu0 0.0
      %330 = vmatpush1.msra.mxu0 0.0
      %331 = vmatprep.subr.mxu0 0.0
      %332 = vmatpush1.msra.mxu0 0.0
      %333 = vmatprep.subr.mxu0 0.0
      %334 = vmatpush1.msra.mxu0 0.0
      %335 = vmatprep.subr.mxu0 0.0
      %336 = vmatpush1.msra.mxu0 0.0
      %337 = vmatprep.subr.mxu0 0.0
      %338 = vmatpush1.msra.mxu0 0.0
      %339 = vmatprep.subr.mxu0 0.0
      %340 = vmatpush1.msra.mxu0 0.0
      %341 = vmatprep.subr.mxu0 0.0
      %342 = vmatpush1.msra.mxu0 0.0
      %343 = vmatprep.subr.mxu0 0.0
      %344 = vmatpush1.msra.mxu0 0.0
      %345 = vmatprep.subr.mxu0 %v223
      %346 = vmatpush1.msra.mxu0 %v222
      %347 = vmatprep.subr.mxu0 %v221
      %348 = vmatpush1.msra.mxu0 %v220
      %349 = vmatprep.subr.mxu0 %v219
      %350 = vmatpush1.msra.mxu0 %v218
      %351 = vmatprep.subr.mxu0 %v217
      %352 = vmatpush1.msra.mxu0 %v216
      %353 = vmatprep.subr.mxu0 0.0
      %354 = vmatpush2.msra.mxu0 0.0
      %355 = vmatprep.subr.mxu0 0.0
      %356 = vmatpush2.msra.mxu0 0.0
      %357 = vmatprep.subr.mxu0 0.0
      %358 = vmatpush2.msra.mxu0 0.0
      %359 = vmatprep.subr.mxu0 0.0
      %360 = vmatpush2.msra.mxu0 0.0
      %361 = vmatprep.subr.mxu0 0.0
      %362 = vmatpush2.msra.mxu0 0.0
      %363 = vmatprep.subr.mxu0 0.0
      %364 = vmatpush2.msra.mxu0 0.0
      %365 = vmatprep.subr.mxu0 0.0
      %366 = vmatpush2.msra.mxu0 0.0
      %367 = vmatprep.subr.mxu0 0.0
      %368 = vmatpush2.msra.mxu0 0.0
      %369 = vmatprep.subr.mxu0 0.0
      %370 = vmatpush2.msra.mxu0 0.0
      %371 = vmatprep.subr.mxu0 0.0
      %372 = vmatpush2.msra.mxu0 0.0
      %373 = vmatprep.subr.mxu0 0.0
      %374 = vmatpush2.msra.mxu0 0.0
      %375 = vmatprep.subr.mxu0 0.0
      %376 = vmatpush2.msra.mxu0 0.0
      %377 = vmatprep.subr.mxu0 0.0
      %378 = vmatpush2.msra.mxu0 0.0
      %379 = vmatprep.subr.mxu0 0.0
      %380 = vmatpush2.msra.mxu0 0.0
      %381 = vmatprep.subr.mxu0 0.0
      %382 = vmatpush2.msra.mxu0 0.0
      %383 = vmatprep.subr.mxu0 0.0
      %384 = vmatpush2.msra.mxu0 0.0
      %385 = vmatprep.mubr.f32.mxu0 0.0
      %386 = vmatmul.mubr.f32.gmra.mxu0 %v226
      %v387 = vpop.f32.mrf.mxu0
      %v388 = vadd.f32 0.0, %v387
      %v389 = vpop.f32.mrf.mxu0
      %v390 = vadd.f32 0.0, %v389
      %391 = vmatprep.mubr.f32.mxu0 0.0
      %392 = vmatmul.mubr.f32.gmra.mxu0 %v229
      %v393 = vpop.f32.mrf.mxu0
      %v394 = vadd.f32 0.0, %v393
      %v395 = vpop.f32.mrf.mxu0
      %v396 = vadd.f32 0.0, %v395
      %397 = vmatprep.mubr.f32.mxu0 0.0
      %398 = vmatmul.mubr.f32.gmra.mxu0 %v232
      %v399 = vpop.f32.mrf.mxu0
      %v400 = vadd.f32 0.0, %v399
      %v401 = vpop.f32.mrf.mxu0
      %v402 = vadd.f32 0.0, %v401
      %403 = vmatprep.mubr.f32.mxu0 0.0
      %404 = vmatmul.mubr.f32.gmra.mxu0 %v235
      %v405 = vpop.f32.mrf.mxu0
      %v406 = vadd.f32 0.0, %v405
      %v407 = vpop.f32.mrf.mxu0
      %v408 = vadd.f32 0.0, %v407
      %409 = vmatprep.mubr.f32.mxu0 0.0
      %410 = vmatmul.mubr.f32.gmra.mxu0 %v238
      %v411 = vpop.f32.mrf.mxu0
      %v412 = vadd.f32 0.0, %v411
      %v413 = vpop.f32.mrf.mxu0
      %v414 = vadd.f32 0.0, %v413
      %415 = vmatprep.mubr.f32.mxu0 0.0
      %416 = vmatmul.mubr.f32.gmra.mxu0 %v241
      %v417 = vpop.f32.mrf.mxu0
      %v418 = vadd.f32 0.0, %v417
      %v419 = vpop.f32.mrf.mxu0
      %v420 = vadd.f32 0.0, %v419
      %421 = vmatprep.mubr.f32.mxu0 0.0
      %422 = vmatmul.mubr.f32.gmra.mxu0 %v244
      %v423 = vpop.f32.mrf.mxu0
      %v424 = vadd.f32 0.0, %v423
      %v425 = vpop.f32.mrf.mxu0
      %v426 = vadd.f32 0.0, %v425
      %427 = vmatprep.mubr.f32.mxu0 0.0
      %428 = vmatmul.mubr.f32.gmra.mxu0 %v247
      %v429 = vpop.f32.mrf.mxu0
      %v430 = vadd.f32 0.0, %v429
      %v431 = vpop.f32.mrf.mxu0
      %v432 = vadd.f32 0.0, %v431
      %433 = vmatprep.mubr.f32.mxu0 0.0
      %434 = vmatmul.mubr.f32.gmra.mxu0 %v250
      %v435 = vpop.f32.mrf.mxu0
      %v436 = vadd.f32 0.0, %v435
      %v437 = vpop.f32.mrf.mxu0
      %v438 = vadd.f32 0.0, %v437
      %439 = vmatprep.mubr.f32.mxu0 0.0
      %440 = vmatmul.mubr.f32.gmra.mxu0 %v253
      %v441 = vpop.f32.mrf.mxu0
      %v442 = vadd.f32 0.0, %v441
      %v443 = vpop.f32.mrf.mxu0
      %v444 = vadd.f32 0.0, %v443
      %445 = vmatprep.mubr.f32.mxu0 0.0
      %446 = vmatmul.mubr.f32.gmra.mxu0 %v256
      %v447 = vpop.f32.mrf.mxu0
      %v448 = vadd.f32 0.0, %v447
      %v449 = vpop.f32.mrf.mxu0
      %v450 = vadd.f32 0.0, %v449
      %451 = vmatprep.mubr.f32.mxu0 0.0
      %452 = vmatmul.mubr.f32.gmra.mxu0 %v259
      %v453 = vpop.f32.mrf.mxu0
      %v454 = vadd.f32 0.0, %v453
      %v455 = vpop.f32.mrf.mxu0
      %v456 = vadd.f32 0.0, %v455
      %457 = vmatprep.mubr.f32.mxu0 0.0
      %458 = vmatmul.mubr.f32.gmra.mxu0 %v262
      %v459 = vpop.f32.mrf.mxu0
      %v460 = vadd.f32 0.0, %v459
      %v461 = vpop.f32.mrf.mxu0
      %v462 = vadd.f32 0.0, %v461
      %463 = vmatprep.mubr.f32.mxu0 0.0
      %464 = vmatmul.mubr.f32.gmra.mxu0 %v265
      %v465 = vpop.f32.mrf.mxu0
      %v466 = vadd.f32 0.0, %v465
      %v467 = vpop.f32.mrf.mxu0
      %v468 = vadd.f32 0.0, %v467
      %469 = vmatprep.mubr.f32.mxu0 0.0
      %470 = vmatmul.mubr.f32.gmra.mxu0 %v268
      %v471 = vpop.f32.mrf.mxu0
      %v472 = vadd.f32 0.0, %v471
      %v473 = vpop.f32.mrf.mxu0
      %v474 = vadd.f32 0.0, %v473
      %475 = vmatprep.mubr.f32.mxu0 0.0
      %476 = vmatmul.mubr.f32.gmra.mxu0 %v271
      %v477 = vpop.f32.mrf.mxu0
      %v478 = vadd.f32 0.0, %v477
      %v479 = vpop.f32.mrf.mxu0
      %v480 = vadd.f32 0.0, %v479
      %481 = vmatprep.mubr.f32.mxu0 0.0
      %482 = vmatmul.mubr.f32.gmra.mxu0 %v274
      %v483 = vpop.f32.mrf.mxu0
      %v484 = vadd.f32 0.0, %v483
      %v485 = vpop.f32.mrf.mxu0
      %v486 = vadd.f32 0.0, %v485
      %487 = vmatprep.mubr.f32.mxu0 0.0
      %488 = vmatmul.mubr.f32.gmra.mxu0 %v277
      %v489 = vpop.f32.mrf.mxu0
      %v490 = vadd.f32 0.0, %v489
      %v491 = vpop.f32.mrf.mxu0
      %v492 = vadd.f32 0.0, %v491
      %493 = vmatprep.mubr.f32.mxu0 0.0
      %494 = vmatmul.mubr.f32.gmra.mxu0 %v280
      %v495 = vpop.f32.mrf.mxu0
      %v496 = vadd.f32 0.0, %v495
      %v497 = vpop.f32.mrf.mxu0
      %v498 = vadd.f32 0.0, %v497
      %499 = vmatprep.mubr.f32.mxu0 0.0
      %500 = vmatmul.mubr.f32.gmra.mxu0 %v283
      %v501 = vpop.f32.mrf.mxu0
      %v502 = vadd.f32 0.0, %v501
      %v503 = vpop.f32.mrf.mxu0
      %v504 = vadd.f32 0.0, %v503
      %505 = vmatprep.mubr.f32.mxu0 0.0
      %506 = vmatmul.mubr.f32.gmra.mxu0 %v286
      %v507 = vpop.f32.mrf.mxu0
      %v508 = vadd.f32 0.0, %v507
      %v509 = vpop.f32.mrf.mxu0
      %v510 = vadd.f32 0.0, %v509
      %511 = vmatprep.mubr.f32.mxu0 0.0
      %512 = vmatmul.mubr.f32.gmra.mxu0 %v289
      %v513 = vpop.f32.mrf.mxu0
      %v514 = vadd.f32 0.0, %v513
      %v515 = vpop.f32.mrf.mxu0
      %v516 = vadd.f32 0.0, %v515
      %517 = vmatprep.mubr.f32.mxu0 0.0
      %518 = vmatmul.mubr.f32.gmra.mxu0 %v292
      %v519 = vpop.f32.mrf.mxu0
      %v520 = vadd.f32 0.0, %v519
      %v521 = vpop.f32.mrf.mxu0
      %v522 = vadd.f32 0.0, %v521
      %523 = vmatprep.mubr.f32.mxu0 0.0
      %524 = vmatmul.mubr.f32.gmra.mxu0 %v295
      %v525 = vpop.f32.mrf.mxu0
      %v526 = vadd.f32 0.0, %v525
      %v527 = vpop.f32.mrf.mxu0
      %v528 = vadd.f32 0.0, %v527
      %529 = vmatprep.mubr.f32.mxu0 0.0
      %530 = vmatmul.mubr.f32.gmra.mxu0 %v298
      %v531 = vpop.f32.mrf.mxu0
      %v532 = vadd.f32 0.0, %v531
      %v533 = vpop.f32.mrf.mxu0
      %v534 = vadd.f32 0.0, %v533
      %535 = vmatprep.mubr.f32.mxu0 0.0
      %536 = vmatmul.mubr.f32.gmra.mxu0 %v301
      %v537 = vpop.f32.mrf.mxu0
      %v538 = vadd.f32 0.0, %v537
      %v539 = vpop.f32.mrf.mxu0
      %v540 = vadd.f32 0.0, %v539
      %541 = vmatprep.mubr.f32.mxu0 0.0
      %542 = vmatmul.mubr.f32.gmra.mxu0 %v304
      %v543 = vpop.f32.mrf.mxu0
      %v544 = vadd.f32 0.0, %v543
      %v545 = vpop.f32.mrf.mxu0
      %v546 = vadd.f32 0.0, %v545
      %547 = vmatprep.mubr.f32.mxu0 0.0
      %548 = vmatmul.mubr.f32.gmra.mxu0 %v307
      %v549 = vpop.f32.mrf.mxu0
      %v550 = vadd.f32 0.0, %v549
      %v551 = vpop.f32.mrf.mxu0
      %v552 = vadd.f32 0.0, %v551
      %553 = vmatprep.mubr.f32.mxu0 0.0
      %554 = vmatmul.mubr.f32.gmra.mxu0 %v310
      %v555 = vpop.f32.mrf.mxu0
      %v556 = vadd.f32 0.0, %v555
      %v557 = vpop.f32.mrf.mxu0
      %v558 = vadd.f32 0.0, %v557
      %559 = vmatprep.mubr.f32.mxu0 0.0
      %560 = vmatmul.mubr.f32.gmra.mxu0 %v313
      %v561 = vpop.f32.mrf.mxu0
      %v562 = vadd.f32 0.0, %v561
      %v563 = vpop.f32.mrf.mxu0
      %v564 = vadd.f32 0.0, %v563
      %565 = vmatprep.mubr.f32.mxu0 0.0
      %566 = vmatmul.mubr.f32.gmra.mxu0 %v316
      %v567 = vpop.f32.mrf.mxu0
      %v568 = vadd.f32 0.0, %v567
      %v569 = vpop.f32.mrf.mxu0
      %v570 = vadd.f32 0.0, %v569
      %571 = vmatprep.mubr.f32.mxu0 0.0
      %572 = vmatmul.mubr.f32.gmra.mxu0 %v319
      %v573 = vpop.f32.mrf.mxu0
      %v574 = vadd.f32 0.0, %v573
      %v575 = vpop.f32.mrf.mxu0
      %v576 = vadd.f32 0.0, %v575
      %577 = vdwg.mxu0
      %v578 = vpack.c.bf16 %v394, %v388
      %v579 = vpack.c.bf16 %v396, %v390
      %v580 = vpack.c.bf16 %v406, %v400
      %v581 = vpack.c.bf16 %v408, %v402
      %v582 = vpack.c.bf16 %v418, %v412
      %v583 = vpack.c.bf16 %v420, %v414
      %v584 = vpack.c.bf16 %v430, %v424
      %v585 = vpack.c.bf16 %v432, %v426
      %v586 = vpack.c.bf16 %v442, %v436
      %v587 = vpack.c.bf16 %v444, %v438
      %v588 = vpack.c.bf16 %v454, %v448
      %v589 = vpack.c.bf16 %v456, %v450
      %v590 = vpack.c.bf16 %v466, %v460
      %v591 = vpack.c.bf16 %v468, %v462
      %v592 = vpack.c.bf16 %v478, %v472
      %v593 = vpack.c.bf16 %v480, %v474
      %v610 = vunpack.c.l.b16 %v578
      %v611 = vunpack.c.l.b16 %v579
      %v612 = vunpack.c.h.b16 %v578
      %v613 = vunpack.c.h.b16 %v579
      %v614 = vunpack.c.l.b16 %v580
      %v615 = vunpack.c.l.b16 %v581
      %v616 = vunpack.c.h.b16 %v580
      %v617 = vunpack.c.h.b16 %v581
      %v618 = vunpack.c.l.b16 %v582
      %v619 = vunpack.c.l.b16 %v583
      %v620 = vunpack.c.h.b16 %v582
      %v621 = vunpack.c.h.b16 %v583
      %v622 = vunpack.c.l.b16 %v584
      %v623 = vunpack.c.l.b16 %v585
      %v624 = vunpack.c.h.b16 %v584
      %v625 = vunpack.c.h.b16 %v585
      %v626 = vunpack.c.l.b16 %v586
      %v627 = vunpack.c.l.b16 %v587
      %v628 = vunpack.c.h.b16 %v586
      %v629 = vunpack.c.h.b16 %v587
      %v630 = vunpack.c.l.b16 %v588
      %v631 = vunpack.c.l.b16 %v589
      %v632 = vunpack.c.h.b16 %v588
      %v633 = vunpack.c.h.b16 %v589
      %v634 = vunpack.c.l.b16 %v590
      %v635 = vunpack.c.l.b16 %v591
      %v636 = vunpack.c.h.b16 %v590
      %v637 = vunpack.c.h.b16 %v591
      %v638 = vunpack.c.l.b16 %v592
      %v639 = vunpack.c.l.b16 %v593
      %v640 = vunpack.c.h.b16 %v592
      %v641 = vunpack.c.h.b16 %v593
      %v642 = vpack.c.b16 %v611, %v610
      %v643 = vpack.c.b16 %v613, %v612
      %v644 = vpack.c.b16 %v615, %v614
      %v645 = vpack.c.b16 %v617, %v616
      %v646 = vpack.c.b16 %v619, %v618
      %v647 = vpack.c.b16 %v621, %v620
      %v648 = vpack.c.b16 %v623, %v622
      %v649 = vpack.c.b16 %v625, %v624
      %v650 = vpack.c.b16 %v627, %v626
      %v651 = vpack.c.b16 %v629, %v628
      %v652 = vpack.c.b16 %v631, %v630
      %v653 = vpack.c.b16 %v633, %v632
      %v654 = vpack.c.b16 %v635, %v634
      %v655 = vpack.c.b16 %v637, %v636
      %v656 = vpack.c.b16 %v639, %v638
      %v657 = vpack.c.b16 %v641, %v640
      %674 = vst [vmem:[%s178] sm:$0xff] %v642
      %675 = vst [vmem:[%s178 + $0x8] sm:$0xff] %v643
      %676 = vst [vmem:[%s178 + $0x10] sm:$0xff] %v644
      %677 = vst [vmem:[%s178 + $0x18] sm:$0xff] %v645
      %678 = vst [vmem:[%s178 + $0x20] sm:$0xff] %v646
      %679 = vst [vmem:[%s178 + $0x28] sm:$0xff] %v647
      %680 = vst [vmem:[%s178 + $0x30] sm:$0xff] %v648
      %681 = vst [vmem:[%s178 + $0x38] sm:$0xff] %v649
      %682 = vst [vmem:[%s178 + $0x40] sm:$0xff] %v650
      %683 = vst [vmem:[%s178 + $0x48] sm:$0xff] %v651
      %684 = vst [vmem:[%s178 + $0x50] sm:$0xff] %v652
      %685 = vst [vmem:[%s178 + $0x58] sm:$0xff] %v653
      %686 = vst [vmem:[%s178 + $0x60] sm:$0xff] %v654
      %687 = vst [vmem:[%s178 + $0x68] sm:$0xff] %v655
      %688 = vst [vmem:[%s178 + $0x70] sm:$0xff] %v656
      %689 = vst [vmem:[%s178 + $0x78] sm:$0xff] %v657
      %v690 = vpack.c.bf16 %v490, %v484
      %v691 = vpack.c.bf16 %v492, %v486
      %v692 = vpack.c.bf16 %v502, %v496
      %v693 = vpack.c.bf16 %v504, %v498
      %v694 = vpack.c.bf16 %v514, %v508
      %v695 = vpack.c.bf16 %v516, %v510
      %v696 = vpack.c.bf16 %v526, %v520
      %v697 = vpack.c.bf16 %v528, %v522
      %v698 = vpack.c.bf16 %v538, %v532
      %v699 = vpack.c.bf16 %v540, %v534
      %v700 = vpack.c.bf16 %v550, %v544
      %v701 = vpack.c.bf16 %v552, %v546
      %v702 = vpack.c.bf16 %v562, %v556
      %v703 = vpack.c.bf16 %v564, %v558
      %v704 = vpack.c.bf16 %v574, %v568
      %v705 = vpack.c.bf16 %v576, %v570
      %v722 = vunpack.c.l.b16 %v690
      %v723 = vunpack.c.l.b16 %v691
      %v724 = vunpack.c.h.b16 %v690
      %v725 = vunpack.c.h.b16 %v691
      %v726 = vunpack.c.l.b16 %v692
      %v727 = vunpack.c.l.b16 %v693
      %v728 = vunpack.c.h.b16 %v692
      %v729 = vunpack.c.h.b16 %v693
      %v730 = vunpack.c.l.b16 %v694
      %v731 = vunpack.c.l.b16 %v695
      %v732 = vunpack.c.h.b16 %v694
      %v733 = vunpack.c.h.b16 %v695
      %v734 = vunpack.c.l.b16 %v696
      %v735 = vunpack.c.l.b16 %v697
      %v736 = vunpack.c.h.b16 %v696
      %v737 = vunpack.c.h.b16 %v697
      %v738 = vunpack.c.l.b16 %v698
      %v739 = vunpack.c.l.b16 %v699
      %v740 = vunpack.c.h.b16 %v698
      %v741 = vunpack.c.h.b16 %v699
      %v742 = vunpack.c.l.b16 %v700
      %v743 = vunpack.c.l.b16 %v701
      %v744 = vunpack.c.h.b16 %v700
      %v745 = vunpack.c.h.b16 %v701
      %v746 = vunpack.c.l.b16 %v702
      %v747 = vunpack.c.l.b16 %v703
      %v748 = vunpack.c.h.b16 %v702
      %v749 = vunpack.c.h.b16 %v703
      %v750 = vunpack.c.l.b16 %v704
      %v751 = vunpack.c.l.b16 %v705
      %v752 = vunpack.c.h.b16 %v704
      %v753 = vunpack.c.h.b16 %v705
      %v754 = vpack.c.b16 %v723, %v722
      %v755 = vpack.c.b16 %v725, %v724
      %v756 = vpack.c.b16 %v727, %v726
      %v757 = vpack.c.b16 %v729, %v728
      %v758 = vpack.c.b16 %v731, %v730
      %v759 = vpack.c.b16 %v733, %v732
      %v760 = vpack.c.b16 %v735, %v734
      %v761 = vpack.c.b16 %v737, %v736
      %v762 = vpack.c.b16 %v739, %v738
      %v763 = vpack.c.b16 %v741, %v740
      %v764 = vpack.c.b16 %v743, %v742
      %v765 = vpack.c.b16 %v745, %v744
      %v766 = vpack.c.b16 %v747, %v746
      %v767 = vpack.c.b16 %v749, %v748
      %v768 = vpack.c.b16 %v751, %v750
      %v769 = vpack.c.b16 %v753, %v752
      %786 = vst [vmem:[%s183] sm:$0xff] %v754
      %787 = vst [vmem:[%s183 + $0x8] sm:$0xff] %v755
      %788 = vst [vmem:[%s183 + $0x10] sm:$0xff] %v756
      %789 = vst [vmem:[%s183 + $0x18] sm:$0xff] %v757
      %790 = vst [vmem:[%s183 + $0x20] sm:$0xff] %v758
      %791 = vst [vmem:[%s183 + $0x28] sm:$0xff] %v759
      %792 = vst [vmem:[%s183 + $0x30] sm:$0xff] %v760
      %793 = vst [vmem:[%s183 + $0x38] sm:$0xff] %v761
      %794 = vst [vmem:[%s183 + $0x40] sm:$0xff] %v762
      %795 = vst [vmem:[%s183 + $0x48] sm:$0xff] %v763
      %796 = vst [vmem:[%s183 + $0x50] sm:$0xff] %v764
      %797 = vst [vmem:[%s183 + $0x58] sm:$0xff] %v765
      %798 = vst [vmem:[%s183 + $0x60] sm:$0xff] %v766
      %799 = vst [vmem:[%s183 + $0x68] sm:$0xff] %v767
      %800 = vst [vmem:[%s183 + $0x70] sm:$0xff] %v768
      %801 = vst [vmem:[%s183 + $0x78] sm:$0xff] %v769
      %p802 = scmp.lt.s32.totalorder %s15, 1
      %s803 = scalar_select %p802, %s15, 1
      %s804 = smul.addr %s803, 32
      %s805 = smul.addr %s804, 4
      %s806 = scalar_lea.vmem %s2, %s805
      %p807 = scmp.lt.s32.totalorder %s15, 1
      %s808 = scalar_select %p807, %s15, 1
      %s809 = smul.addr %s808, 32
      %s810 = smul.addr %s809, 4
      %s811 = scalar_lea.vmem %s3, %s810
      // Predicated region
      $region29: #{attention_forward.2} parent=27 // pred_check
        %p812 = pneg %p80
      $region30: #{attention_forward.2} parent=27 // pred_check_branch
        %814 = sbr.rel (%p812) target = $region32
      $region31: #{attention_forward.2} parent=27 // pred_region
        _
      $region32: #{attention_forward.2} parent=27 // pred_fallthru
        _
      // Predicated region
      $region33: #{attention_forward.2} parent=27 // pred_check
        %p815 = pneg %p106
      $region34: #{attention_forward.2} parent=27 // pred_check_branch
        %817 = sbr.rel (%p815) target = $region36
      $region35: #{attention_forward.2} parent=27 // pred_region
        _
      $region36: #{attention_forward.2} parent=27 // pred_fallthru
        _
    $region28: #{attention_forward.2} parent=5 // pred_fallthru
      _
    %p818 = scmp.le.s32.totalorder 2, %s10
    // Predicated region
    $region37: #{attention_forward.2} parent=5 // pred_check
      %p819 = pneg %p818
    $region38: #{attention_forward.2} parent=5 // pred_check_branch
      %821 = sbr.rel (%p819) target = $region40
    $region39: #{attention_forward.2} parent=5 // pred_region
      %s822 = ssub.s32 %s10, 2
      // Predicated region
      $region41: #{attention_forward.2} parent=39 // pred_check
        %p823 = pneg %p86
      $region42: #{attention_forward.2} parent=39 // pred_check_branch
        %825 = sbr.rel (%p823) target = $region44
      $region43: #{attention_forward.2} parent=39 // pred_region
        %p826 = scmp.lt.s32.totalorder %s16, 1
        %s827 = scalar_select %p826, %s16, 1
        %s828 = smul.addr %s827, 32
        %s829 = smul.addr %s828, 4
        %s830 = scalar_lea.vmem %s2, %s829
      $region44: #{attention_forward.2} parent=39 // pred_fallthru
        _
      // Predicated region
      $region45: #{attention_forward.2} parent=39 // pred_check
        %p831 = pneg %p112
      $region46: #{attention_forward.2} parent=39 // pred_check_branch
        %833 = sbr.rel (%p831) target = $region48
      $region47: #{attention_forward.2} parent=39 // pred_region
        %p834 = scmp.lt.s32.totalorder %s16, 1
        %s835 = scalar_select %p834, %s16, 1
        %s836 = smul.addr %s835, 32
        %s837 = smul.addr %s836, 4
        %s838 = scalar_lea.vmem %s3, %s837
      $region48: #{attention_forward.2} parent=39 // pred_fallthru
        _
    $region40: #{attention_forward.2} parent=5 // pred_fallthru
      _
  $region6: #{attention_forward.2} parent=0 // loop_footer
    %s14 = sadd.s32 1, %s10
  $region7: #{attention_forward.2} parent=0 // loop_footer_branch
    %9 = sbr.rel target = $region3
  $region8: #{attention_forward.2} parent=0 // loop_exit
    _

// kernel: attention_forward.3
$region0: #{attention_forward.3}
  #allocation0 [shape = 'u32[]', space=smem, size = 0x4, offset = 0x4, fixed_abs, tag = 'smem constant byte address 0x4 - core index']
  #allocation1 [shape = 'u32[144,128]{1,0:T(1,128)}', space=vmem, size = 0x12000, scoped, tag = 'internal scratch']
  %s0 = inlined_call_operand.vmem [shape: bf16[4,64,256], index: 0, kind: input, shape index: {}]
  %s1 = inlined_call_operand.vmem [shape: bf16[4,64,256], index: 1, kind: input, shape index: {}]
  %s2 = inlined_call_operand.hbm [shape: f32[4,256,256], index: 2, kind: output, shape index: {}]
  %s3 = sld [smem:[#allocation0]]
  $region82: #{attention_forward.3} parent=0
    _
  %s5 = ssub.s32 1, %s3
  %s6 = scalar_select 0, %s5, %s3
  $region1: #{attention_forward.3} parent=0
    #allocation2 [shape = 'u8[32768]{0}', space=vmem, size = 0x8000, scoped, tag = 'input window, operand 0']
    #allocation3 [shape = 'u8[262144]{0}', space=vmem, size = 0x40000, scoped, tag = 'output window, operand 0']
    #allocation4 [shape = 's32[2]{0}', space=sflag, size = 0x8, scoped, tag = 'scoped memory for attention_forward.3']
    %7 = vsyncpa [#allocation4], 0
    %s8 = scalar_lea.sflag [#allocation4], 1
    %9 = vsyncpa %s8, 0
    loop: start=0, step=1, limit=10
    $region2: #{attention_forward.3} parent=1 // loop_pre_header
      _
    $region3: #{attention_forward.3} parent=1 // loop_header
      %s11 = sphi 0, %s15
      %p12 = scmp.ge.s32.totalorder %s11, 10
      %s18 = sphi 0, %s30
      %s19 = sphi 0, %s26
      %s20 = sphi 0, %s18
      %s21 = sphi 0, %s19
      %s22 = sphi 0, %s20
      %s23 = sphi 0, %s21
      %s35 = sphi 0, %s37
      %s38 = sphi 0, %s35
      %s39 = sphi 0, %s38
      %s55 = sphi 0, %s39
      %s61 = sphi 0, %s63
      %s64 = sphi 0, %s61
      %s65 = sphi 0, %s64
      %s81 = sphi 0, %s65
      %s89 = sphi 0, %s91
      %s92 = sphi 0, %s89
      %s93 = sphi 0, %s92
      %s109 = sphi 0, %s93
    $region4: #{attention_forward.3} parent=1 // loop_header_branch
      %14 = sbr.rel (%p12) target = $region8
    $region5: #{attention_forward.3} parent=1 // loop_body
      %s16 = ssub.s32 %s11, 1
      %s17 = ssub.s32 %s11, 2
      %s24 = sadd.s32 1, %s19
      %p25 = scmp.ge.s32.totalorder %s24, 2
      %s26 = scalar_select %p25, 0, %s24
      %s27 = sadd.s32 1, %s18
      %s28 = scalar_select %p25, %s27, %s18
      %p29 = scmp.ge.s32.totalorder %s28, 4
      %s30 = scalar_select %p29, 0, %s28
      %s31 = ssub.s32 %s18, %s30
      %s32 = ssub.s32 %s19, %s26
      %s33 = sor.u32 %s31, %s32
      %p34 = scmp.eq.s32.totalorder %s33, 0
      %s36 = sadd.s32 %s35, 1
      %s37 = scalar_select %p34, %s35, %s36
      %p40 = pneg %p34
      %p41 = scmp.eq.s32.totalorder %s11, 7
      %p42 = por %p40, %p41
      %p43 = scmp.ne.s32.totalorder %s35, %s38
      %p44 = scmp.eq.s32.totalorder %s11, 0
      %p45 = por %p43, %p44
      %p46 = scmp.ne.s32.totalorder %s35, %s38
      %p47 = scmp.eq.s32.totalorder %s16, 7
      %p48 = por %p46, %p47
      %p49 = scmp.ne.s32.totalorder %s38, %s39
      %p50 = scmp.eq.s32.totalorder %s16, 0
      %p51 = por %p49, %p50
      %p52 = scmp.ne.s32.totalorder %s38, %s39
      %p53 = scmp.eq.s32.totalorder %s17, 7
      %p54 = por %p52, %p53
      %p56 = scmp.ne.s32.totalorder %s39, %s55
      %p57 = scmp.eq.s32.totalorder %s17, 0
      %p58 = por %p56, %p57
      %s59 = ssub.s32 %s18, %s30
      %p60 = scmp.eq.s32.totalorder %s59, 0
      %s62 = sadd.s32 %s61, 1
      %s63 = scalar_select %p60, %s61, %s62
      %p66 = pneg %p60
      %p67 = scmp.eq.s32.totalorder %s11, 7
      %p68 = por %p66, %p67
      %p69 = scmp.ne.s32.totalorder %s61, %s64
      %p70 = scmp.eq.s32.totalorder %s11, 0
      %p71 = por %p69, %p70
      %p72 = scmp.ne.s32.totalorder %s61, %s64
      %p73 = scmp.eq.s32.totalorder %s16, 7
      %p74 = por %p72, %p73
      %p75 = scmp.ne.s32.totalorder %s64, %s65
      %p76 = scmp.eq.s32.totalorder %s16, 0
      %p77 = por %p75, %p76
      %p78 = scmp.ne.s32.totalorder %s64, %s65
      %p79 = scmp.eq.s32.totalorder %s17, 7
      %p80 = por %p78, %p79
      %p82 = scmp.ne.s32.totalorder %s65, %s81
      %p83 = scmp.eq.s32.totalorder %s17, 0
      %p84 = por %p82, %p83
      %s85 = ssub.s32 %s18, %s30
      %s86 = ssub.s32 %s19, %s26
      %s87 = sor.u32 %s85, %s86
      %p88 = scmp.eq.s32.totalorder %s87, 0
      %s90 = sadd.s32 %s89, 1
      %s91 = scalar_select %p88, %s89, %s90
      %p94 = pneg %p88
      %p95 = scmp.eq.s32.totalorder %s11, 7
      %p96 = por %p94, %p95
      %p97 = scmp.ne.s32.totalorder %s89, %s92
      %p98 = scmp.eq.s32.totalorder %s11, 0
      %p99 = por %p97, %p98
      %p100 = scmp.ne.s32.totalorder %s89, %s92
      %p101 = scmp.eq.s32.totalorder %s16, 7
      %p102 = por %p100, %p101
      %p103 = scmp.ne.s32.totalorder %s92, %s93
      %p104 = scmp.eq.s32.totalorder %s16, 0
      %p105 = por %p103, %p104
      %p106 = scmp.ne.s32.totalorder %s92, %s93
      %p107 = scmp.eq.s32.totalorder %s17, 7
      %p108 = por %p106, %p107
      %p110 = scmp.ne.s32.totalorder %s93, %s109
      %p111 = scmp.eq.s32.totalorder %s17, 0
      %p112 = por %p110, %p111
      %p113 = scmp.le.s32.totalorder 1, %s11
      %p114 = scmp.lt.s32.totalorder %s11, 9
      %p115 = pnand %p113, %p114
      %p116 = pneg %p115
      // Predicated region
      $region9: #{attention_forward.3} parent=5 // pred_check
        _
      $region10: #{attention_forward.3} parent=5 // pred_check_branch
        %118 = sbr.rel (%p115) target = $region12
      $region11: #{attention_forward.3} parent=5 // pred_region
        %s119 = ssub.s32 %s11, 1
      $region12: #{attention_forward.3} parent=5 // pred_fallthru
        _
      %p120 = scmp.lt.s32.totalorder %s11, 8
      // Predicated region
      $region13: #{attention_forward.3} parent=5 // pred_check
        %p121 = pneg %p120
      $region14: #{attention_forward.3} parent=5 // pred_check_branch
        %123 = sbr.rel (%p121) target = $region16
      $region15: #{attention_forward.3} parent=5 // pred_region
        // Predicated region
        $region17: #{attention_forward.3} parent=15 // pred_check
          %p124 = pneg %p45
        $region18: #{attention_forward.3} parent=15 // pred_check_branch
          %126 = sbr.rel (%p124) target = $region20
        $region19: #{attention_forward.3} parent=15 // pred_region
          %s127 = sand.u32 %s35, 1
          %s128 = sand.u32 %s35, 1
          %s129 = smul.addr %s128, 32
          %s130 = scalar_lea.vmem [#allocation2], %s129
          %s131 = smul.addr %s18, 16
          %s132 = sadd.s32 %s19, %s131
          %s133 = smul.addr %s132, 4
          %s134 = scalar_lea.vmem %s0, %s133
          // Predicated region
          $region21: #{attention_forward.3} parent=19 // pred_check
            _
          $region22: #{attention_forward.3} parent=19 // pred_check_branch
            %136 = sbr.rel (0) target = $region24
          $region23: #{attention_forward.3} parent=19 // pred_region
            // Predicated region
            $region25: #{attention_forward.3} parent=23 // pred_check
              _
            $region26: #{attention_forward.3} parent=23 // pred_check_branch
              %138 = sbr.rel target = $region28
            $region27: #{attention_forward.3} parent=23 // pred_region
              // Predicated region
              $region40: #{attention_forward.3} parent=27 // pred_check
                _
              $region41: #{attention_forward.3} parent=27 // pred_check_branch
                %168 = sbr.rel (0) target = $region43
              $region42: #{attention_forward.3} parent=27 // pred_region
                loop: start=0, step=1, limit=1
                $region44: #{attention_forward.3} parent=42 // loop_pre_header
                  _
                $region45: #{attention_forward.3} parent=42 // loop_header
                  %s170 = sphi 0, %s174
                  %p171 = scmp.ge.s32.totalorder %s170, 1
                  %s175 = sphi %s134, %s134
                  %s176 = sphi %s130, %s130
                $region46: #{attention_forward.3} parent=42 // loop_header_branch
                  %173 = sbr.rel (%p171) target = $region50
                $region47: #{attention_forward.3} parent=42 // loop_body
                  _
                $region48: #{attention_forward.3} parent=42 // loop_footer
                  %s174 = sadd.s32 1, %s170
                $region49: #{attention_forward.3} parent=42 // loop_footer_branch
                  %169 = sbr.rel target = $region45
                $region50: #{attention_forward.3} parent=42 // loop_exit
                  _
                %s178 = ssub.s32 16, 1
                loop: start=0, step=1, limit=1
                $region51: #{attention_forward.3} parent=42 // loop_pre_header
                  _
                $region52: #{attention_forward.3} parent=42 // loop_header
                  %s180 = sphi 0, %s184
                  %p181 = scmp.ge.s32.totalorder %s180, 1
                  %s185 = sphi %s134, %s134
                  %s186 = sphi %s130, %s130
                $region53: #{attention_forward.3} parent=42 // loop_header_branch
                  %183 = sbr.rel (%p181) target = $region57
                $region54: #{attention_forward.3} parent=42 // loop_body
                  %v187 = vld [vmem:[%s185] sm:%s178]
                  %188 = vst [vmem:[%s186] sm:%s178] %v187
                  %v189 = vld [vmem:[%s185 + $0x8] sm:%s178]
                  %190 = vst [vmem:[%s186 + $0x4] sm:%s178] %v189
                  %v191 = vld [vmem:[%s185 + $0x10] sm:%s178]
                  %192 = vst [vmem:[%s186 + $0x8] sm:%s178] %v191
                  %v193 = vld [vmem:[%s185 + $0x18] sm:%s178]
                  %194 = vst [vmem:[%s186 + $0xc] sm:%s178] %v193
                  %v195 = vld [vmem:[%s185 + $0x20] sm:%s178]
                  %196 = vst [vmem:[%s186 + $0x10] sm:%s178] %v195
                  %v197 = vld [vmem:[%s185 + $0x28] sm:%s178]
                  %198 = vst [vmem:[%s186 + $0x14] sm:%s178] %v197
                  %v199 = vld [vmem:[%s185 + $0x30] sm:%s178]
                  %200 = vst [vmem:[%s186 + $0x18] sm:%s178] %v199
                  %v201 = vld [vmem:[%s185 + $0x38] sm:%s178]
                  %202 = vst [vmem:[%s186 + $0x1c] sm:%s178] %v201
                $region55: #{attention_forward.3} parent=42 // loop_footer
                  %s184 = sadd.s32 1, %s180
                $region56: #{attention_forward.3} parent=42 // loop_footer_branch
                  %179 = sbr.rel target = $region52
                $region57: #{attention_forward.3} parent=42 // loop_exit
                  _
              $region43: #{attention_forward.3} parent=27 // pred_fallthru
                _
            $region28: #{attention_forward.3} parent=23 // pred_fallthru
              _
            // Predicated region
            $region29: #{attention_forward.3} parent=23 // pred_check
              _
            $region30: #{attention_forward.3} parent=23 // pred_check_branch
              %140 = sbr.rel (0) target = $region32
            $region31: #{attention_forward.3} parent=23 // pred_region
              %s142 = ssub.s32 16, 1
              loop: start=0, step=1, limit=1
              $region33: #{attention_forward.3} parent=31 // loop_pre_header
                _
              $region34: #{attention_forward.3} parent=31 // loop_header
                %s144 = sphi 0, %s148
                %p145 = scmp.ge.s32.totalorder %s144, 1
                %s149 = sphi %s134, %s134
                %s150 = sphi %s130, %s130
              $region35: #{attention_forward.3} parent=31 // loop_header_branch
                %147 = sbr.rel (%p145) target = $region39
              $region36: #{attention_forward.3} parent=31 // loop_body
                %v151 = vld [vmem:[%s149] sm:%s142]
                %152 = vst [vmem:[%s150] sm:%s142] %v151
                %v153 = vld [vmem:[%s149 + $0x8] sm:%s142]
                %154 = vst [vmem:[%s150 + $0x4] sm:%s142] %v153
                %v155 = vld [vmem:[%s149 + $0x10] sm:%s142]
                %156 = vst [vmem:[%s150 + $0x8] sm:%s142] %v155
                %v157 = vld [vmem:[%s149 + $0x18] sm:%s142]
                %158 = vst [vmem:[%s150 + $0xc] sm:%s142] %v157
                %v159 = vld [vmem:[%s149 + $0x20] sm:%s142]
                %160 = vst [vmem:[%s150 + $0x10] sm:%s142] %v159
                %v161 = vld [vmem:[%s149 + $0x28] sm:%s142]
                %162 = vst [vmem:[%s150 + $0x14] sm:%s142] %v161
                %v163 = vld [vmem:[%s149 + $0x30] sm:%s142]
                %164 = vst [vmem:[%s150 + $0x18] sm:%s142] %v163
                %v165 = vld [vmem:[%s149 + $0x38] sm:%s142]
                %166 = vst [vmem:[%s150 + $0x1c] sm:%s142] %v165
              $region37: #{attention_forward.3} parent=31 // loop_footer
                %s148 = sadd.s32 1, %s144
              $region38: #{attention_forward.3} parent=31 // loop_footer_branch
                %143 = sbr.rel target = $region34
              $region39: #{attention_forward.3} parent=31 // loop_exit
                _
            $region32: #{attention_forward.3} parent=23 // pred_fallthru
              _
          $region24: #{attention_forward.3} parent=19 // pred_fallthru
            _
          %203 = vnop
        $region20: #{attention_forward.3} parent=15 // pred_fallthru
          _
        // Predicated region
        $region58: #{attention_forward.3} parent=15 // pred_check
          %p204 = pneg %p71
        $region59: #{attention_forward.3} parent=15 // pred_check_branch
          %206 = sbr.rel (%p204) target = $region61
        $region60: #{attention_forward.3} parent=15 // pred_region
          %p207 = scmp.lt.s32.totalorder %s18, 3
          %s208 = scalar_select %p207, %s18, 3
          %s209 = smul.addr %s208, 16
          %s210 = smul.addr %s209, 4
          %s211 = scalar_lea.vmem %s1, %s210
        $region61: #{attention_forward.3} parent=15 // pred_fallthru
          _
      $region16: #{attention_forward.3} parent=5 // pred_fallthru
        _
      %p212 = scmp.le.s32.totalorder 1, %s11
      %p213 = scmp.lt.s32.totalorder %s11, 9
      %p214 = pnand %p212, %p213
      %p215 = pneg %p214
      // Predicated region
      $region62: #{attention_forward.3} parent=5 // pred_check
        _
      $region63: #{attention_forward.3} parent=5 // pred_check_branch
        %217 = sbr.rel (%p214) target = $region65
      $region64: #{attention_forward.3} parent=5 // pred_region
        %s218 = ssub.s32 %s11, 1
        %s219 = sand.u32 %s38, 1
        %s220 = sand.u32 %s38, 1
        %s221 = smul.addr %s220, 32
        %s222 = scalar_lea.vmem [#allocation2], %s221
        // Predicated region
        $region66: #{attention_forward.3} parent=64 // pred_check
          %p223 = pneg %p51
        $region67: #{attention_forward.3} parent=64 // pred_check_branch
          %225 = sbr.rel (%p223) target = $region69
        $region68: #{attention_forward.3} parent=64 // pred_region
          _
        $region69: #{attention_forward.3} parent=64 // pred_fallthru
          _
        %s226 = sand.u32 %s38, 1
        %s227 = sand.u32 %s38, 1
        %s228 = smul.addr %s227, 32
        %s229 = scalar_lea.vmem [#allocation2], %s228
        %p230 = pneg %p51
        %p231 = pneg %p48
        %p232 = scmp.lt.s32.totalorder %s20, 3
        %s233 = scalar_select %p232, %s20, 3
        %s234 = smul.addr %s233, 16
        %s235 = smul.addr %s234, 4
        %s236 = scalar_lea.vmem %s1, %s235
        %p237 = pneg %p77
        %p238 = pneg %p74
        %p239 = pneg %p105
        %p240 = pneg %p102
        %s241 = sand.u32 %s92, 1
        %s242 = scalar_lea.sflag [#allocation4], %s241
        %s243 = sand.u32 %s92, 1
        %s244 = smul.addr %s243, 256
        %s245 = scalar_lea.vmem [#allocation3], %s244
        %p246 = scmp.lt.s32.totalorder %s20, 3
        %s247 = scalar_select %p246, %s20, 3
        %s248 = smul.addr %s247, 16
        %s249 = smul.addr %s248, 4
        %s250 = scalar_lea.vmem %s1, %s249
        %s251 = smul.u32 16, %s21
        %v253 = vld [vmem:[%s222] sm:$0xf]
        %v254 = vld [vmem:[%s222 + $0x4] sm:$0xf]
        %v255 = vld [vmem:[%s222 + $0x8] sm:$0xf]
        %v256 = vld [vmem:[%s222 + $0xc] sm:$0xf]
        %v257 = vld [vmem:[%s222 + $0x10] sm:$0xf]
        %v258 = vld [vmem:[%s222 + $0x14] sm:$0xf]
        %v259 = vld [vmem:[%s222 + $0x18] sm:$0xf]
        %v260 = vld [vmem:[%s222 + $0x1c] sm:$0xf]
        %v261 = vld [vmem:[%s250] sm:$0xff]
        %v262 = vld [vmem:[%s250 + $0x8] sm:$0xff]
        %v263 = vld [vmem:[%s250 + $0x10] sm:$0xff]
        %v264 = vld [vmem:[%s250 + $0x18] sm:$0xff]
        %v265 = vld [vmem:[%s250 + $0x20] sm:$0xff]
        %v266 = vld [vmem:[%s250 + $0x28] sm:$0xff]
        %v267 = vld [vmem:[%s250 + $0x30] sm:$0xff]
        %v268 = vld [vmem:[%s250 + $0x38] sm:$0xff]
        %v277 = vunpack.c.l.b16 %v253
        %v278 = vunpack.c.l.b16 %v254
        %v279 = vunpack.c.l.b16 %v255
        %v280 = vunpack.c.l.b16 %v256
        %v281 = vunpack.c.l.b16 %v257
        %v282 = vunpack.c.l.b16 %v258
        %v283 = vunpack.c.l.b16 %v259
        %v284 = vunpack.c.l.b16 %v260
        %v285 = vpack.c.b16 %v278, %v277
        %v286 = vpack.c.b16 %v280, %v279
        %v287 = vpack.c.b16 %v282, %v281
        %v288 = vpack.c.b16 %v284, %v283
        %293 = vxpose.xlu0.c.b16.start [1/8] %v285, 128
        %294 = vxpose.xlu0.c.b16.cont [2/8] %v286, 128
        %295 = vxpose.xlu0.c.b16.cont [3/8] %v287, 128
        %296 = vxpose.xlu0.c.b16.cont [4/8] %v288, 128
        %297 = vxpose.xlu0.c.b16.cont [5/8] 0, 128
        %298 = vxpose.xlu0.c.b16.cont [6/8] 0, 128
        %299 = vxpose.xlu0.c.b16.cont [7/8] 0, 128
        %300 = vxpose.xlu0.c.b16.end [8/8] 0, 128
        %v301 = vpop.trf.xlu0
        %v302 = vpop.trf.xlu0
        %v303 = vpop.trf.xlu0
        %v304 = vpop.trf.xlu0
        %v305 = vpop.trf.xlu0
        %v306 = vpop.trf.xlu0
        %v307 = vpop.trf.xlu0
        %v308 = vpop.trf.xlu0
        %v317 = vunpack.c.l.b16 %v261
        %v318 = vunpack.c.h.b16 %v261
        %v319 = vunpack.c.l.b16 %v262
        %v320 = vunpack.c.h.b16 %v262
        %v321 = vunpack.c.l.b16 %v263
        %v322 = vunpack.c.h.b16 %v263
        %v323 = vunpack.c.l.b16 %v264
        %v324 = vunpack.c.h.b16 %v264
        %v325 = vunpack.c.l.b16 %v265
        %v326 = vunpack.c.h.b16 %v265
        %v327 = vunpack.c.l.b16 %v266
        %v328 = vunpack.c.h.b16 %v266
        %v329 = vunpack.c.l.b16 %v267
        %v330 = vunpack.c.h.b16 %v267
        %v331 = vunpack.c.l.b16 %v268
        %v332 = vunpack.c.h.b16 %v268
        %v333 = vpack.c.b16 %v319, %v317
        %v334 = vpack.c.b16 %v320, %v318
        %v335 = vpack.c.b16 %v323, %v321
        %v336 = vpack.c.b16 %v324, %v322
        %v337 = vpack.c.b16 %v327, %v325
        %v338 = vpack.c.b16 %v328, %v326
        %v339 = vpack.c.b16 %v331, %v329
        %v340 = vpack.c.b16 %v332, %v330
        %vm349 = vcmask 523264
        %v351 = vsel %vm349, %v301, 0
        %v354 = vsel %vm349, %v302, 0
        %v357 = vsel %vm349, %v303, 0
        %v360 = vsel %vm349, %v304, 0
        %v363 = vsel %vm349, %v305, 0
        %v366 = vsel %vm349, %v306, 0
        %v369 = vsel %vm349, %v307, 0
        %v372 = vsel %vm349, %v308, 0
        %374 = vmatprep.subr.bf16.mxu0 0
        %375 = vmatpush1.bf16.msra.mxu0 0
        %376 = vmatprep.subr.bf16.mxu0 0
        %377 = vmatpush1.bf16.msra.mxu0 0
        %378 = vmatprep.subr.bf16.mxu0 0
        %379 = vmatpush1.bf16.msra.mxu0 0
        %380 = vmatprep.subr.bf16.mxu0 0
        %381 = vmatpush1.bf16.msra.mxu0 0
        %382 = vmatprep.subr.bf16.mxu0 %v340
        %383 = vmatpush1.bf16.msra.mxu0 %v339
        %384 = vmatprep.subr.bf16.mxu0 %v338
        %385 = vmatpush1.bf16.msra.mxu0 %v337
        %386 = vmatprep.subr.bf16.mxu0 %v336
        %387 = vmatpush1.bf16.msra.mxu0 %v335
        %388 = vmatprep.subr.bf16.mxu0 %v334
        %389 = vmatpush1.bf16.msra.mxu0 %v333
        %390 = vmatprep.subr.bf16.mxu0 0
        %391 = vmatpush2.bf16.msra.mxu0 0
        %392 = vmatprep.subr.bf16.mxu0 0
        %393 = vmatpush2.bf16.msra.mxu0 0
        %394 = vmatprep.subr.bf16.mxu0 0
        %395 = vmatpush2.bf16.msra.mxu0 0
        %396 = vmatprep.subr.bf16.mxu0 0
        %397 = vmatpush2.bf16.msra.mxu0 0
        %398 = vmatprep.subr.bf16.mxu0 0
        %399 = vmatpush2.bf16.msra.mxu0 0
        %400 = vmatprep.subr.bf16.mxu0 0
        %401 = vmatpush2.bf16.msra.mxu0 0
        %402 = vmatprep.subr.bf16.mxu0 0
        %403 = vmatpush2.bf16.msra.mxu0 0
        %404 = vmatprep.subr.bf16.mxu0 0
        %405 = vmatpush2.bf16.msra.mxu0 0
        %406 = vmatprep.mubr.bf16.mxu0 0
        %407 = vmatmul.mubr.bf16.gmra.mxu0 %v351
        %v408 = vpop.f32.mrf.mxu0
        %v409 = vadd.f32 0.0, %v408
        %v410 = vpop.f32.mrf.mxu0
        %v411 = vadd.f32 0.0, %v410
        %v412 = vpop.f32.mrf.mxu0
        %v413 = vadd.f32 0.0, %v412
        %v414 = vpop.f32.mrf.mxu0
        %v415 = vadd.f32 0.0, %v414
        %416 = vmatprep.mubr.bf16.mxu0 0
        %417 = vmatmul.mubr.bf16.gmra.mxu0 %v354
        %v418 = vpop.f32.mrf.mxu0
        %v419 = vadd.f32 0.0, %v418
        %v420 = vpop.f32.mrf.mxu0
        %v421 = vadd.f32 0.0, %v420
        %v422 = vpop.f32.mrf.mxu0
        %v423 = vadd.f32 0.0, %v422
        %v424 = vpop.f32.mrf.mxu0
        %v425 = vadd.f32 0.0, %v424
        %426 = vmatprep.mubr.bf16.mxu0 0
        %427 = vmatmul.mubr.bf16.gmra.mxu0 %v357
        %v428 = vpop.f32.mrf.mxu0
        %v429 = vadd.f32 0.0, %v428
        %v430 = vpop.f32.mrf.mxu0
        %v431 = vadd.f32 0.0, %v430
        %v432 = vpop.f32.mrf.mxu0
        %v433 = vadd.f32 0.0, %v432
        %v434 = vpop.f32.mrf.mxu0
        %v435 = vadd.f32 0.0, %v434
        %436 = vmatprep.mubr.bf16.mxu0 0
        %437 = vmatmul.mubr.bf16.gmra.mxu0 %v360
        %v438 = vpop.f32.mrf.mxu0
        %v439 = vadd.f32 0.0, %v438
        %v440 = vpop.f32.mrf.mxu0
        %v441 = vadd.f32 0.0, %v440
        %v442 = vpop.f32.mrf.mxu0
        %v443 = vadd.f32 0.0, %v442
        %v444 = vpop.f32.mrf.mxu0
        %v445 = vadd.f32 0.0, %v444
        %446 = vmatprep.mubr.bf16.mxu0 0
        %447 = vmatmul.mubr.bf16.gmra.mxu0 %v363
        %v448 = vpop.f32.mrf.mxu0
        %v449 = vadd.f32 0.0, %v448
        %v450 = vpop.f32.mrf.mxu0
        %v451 = vadd.f32 0.0, %v450
        %v452 = vpop.f32.mrf.mxu0
        %v453 = vadd.f32 0.0, %v452
        %v454 = vpop.f32.mrf.mxu0
        %v455 = vadd.f32 0.0, %v454
        %456 = vmatprep.mubr.bf16.mxu0 0
        %457 = vmatmul.mubr.bf16.gmra.mxu0 %v366
        %v458 = vpop.f32.mrf.mxu0
        %v459 = vadd.f32 0.0, %v458
        %v460 = vpop.f32.mrf.mxu0
        %v461 = vadd.f32 0.0, %v460
        %v462 = vpop.f32.mrf.mxu0
        %v463 = vadd.f32 0.0, %v462
        %v464 = vpop.f32.mrf.mxu0
        %v465 = vadd.f32 0.0, %v464
        %466 = vmatprep.mubr.bf16.mxu0 0
        %467 = vmatmul.mubr.bf16.gmra.mxu0 %v369
        %v468 = vpop.f32.mrf.mxu0
        %v469 = vadd.f32 0.0, %v468
        %v470 = vpop.f32.mrf.mxu0
        %v471 = vadd.f32 0.0, %v470
        %v472 = vpop.f32.mrf.mxu0
        %v473 = vadd.f32 0.0, %v472
        %v474 = vpop.f32.mrf.mxu0
        %v475 = vadd.f32 0.0, %v474
        %476 = vmatprep.mubr.bf16.mxu0 0
        %477 = vmatmul.mubr.bf16.gmra.mxu0 %v372
        %v478 = vpop.f32.mrf.mxu0
        %v479 = vadd.f32 0.0, %v478
        %v480 = vpop.f32.mrf.mxu0
        %v481 = vadd.f32 0.0, %v480
        %v482 = vpop.f32.mrf.mxu0
        %v483 = vadd.f32 0.0, %v482
        %v484 = vpop.f32.mrf.mxu0
        %v485 = vadd.f32 0.0, %v484
        %486 = vdwg.mxu0
        %v487 = vmax.f32 %v409, %v411
        %488 = vmax.xlane.f32.xlu0 %v487
        %v489 = vpop.xlane.xlu0 %488
        %v490 = vmax.f32 %v413, %v415
        %491 = vmax.xlane.f32.xlu0 %v490
        %v492 = vpop.xlane.xlu0 %491
        %v493 = vmax.f32 %v419, %v421
        %494 = vmax.xlane.f32.xlu0 %v493
        %v495 = vpop.xlane.xlu0 %494
        %v496 = vmax.f32 %v423, %v425
        %497 = vmax.xlane.f32.xlu0 %v496
        %v498 = vpop.xlane.xlu0 %497
        %v499 = vmax.f32 %v429, %v431
        %500 = vmax.xlane.f32.xlu0 %v499
        %v501 = vpop.xlane.xlu0 %500
        %v502 = vmax.f32 %v433, %v435
        %503 = vmax.xlane.f32.xlu0 %v502
        %v504 = vpop.xlane.xlu0 %503
        %v505 = vmax.f32 %v439, %v441
        %506 = vmax.xlane.f32.xlu0 %v505
        %v507 = vpop.xlane.xlu0 %506
        %v508 = vmax.f32 %v443, %v445
        %509 = vmax.xlane.f32.xlu0 %v508
        %v510 = vpop.xlane.xlu0 %509
        %v511 = vmax.f32 %v449, %v451
        %512 = vmax.xlane.f32.xlu0 %v511
        %v513 = vpop.xlane.xlu0 %512
        %v514 = vmax.f32 %v453, %v455
        %515 = vmax.xlane.f32.xlu0 %v514
        %v516 = vpop.xlane.xlu0 %515
        %v517 = vmax.f32 %v459, %v461
        %518 = vmax.xlane.f32.xlu0 %v517
        %v519 = vpop.xlane.xlu0 %518
        %v520 = vmax.f32 %v463, %v465
        %521 = vmax.xlane.f32.xlu0 %v520
        %v522 = vpop.xlane.xlu0 %521
        %v523 = vmax.f32 %v469, %v471
        %524 = vmax.xlane.f32.xlu0 %v523
        %v525 = vpop.xlane.xlu0 %524
        %v526 = vmax.f32 %v473, %v475
        %527 = vmax.xlane.f32.xlu0 %v526
        %v528 = vpop.xlane.xlu0 %527
        %v529 = vmax.f32 %v479, %v481
        %530 = vmax.xlane.f32.xlu0 %v529
        %v531 = vpop.xlane.xlu0 %530
        %v532 = vmax.f32 %v483, %v485
        %533 = vmax.xlane.f32.xlu0 %v532
        %v534 = vpop.xlane.xlu0 %533
        %v535 = vsub.f32 %v409, %v489
        %v536 = vsub.f32 %v411, %v489
        %v537 = vsub.f32 %v413, %v492
        %v538 = vsub.f32 %v415, %v492
        %v539 = vsub.f32 %v419, %v495
        %v540 = vsub.f32 %v421, %v495
        %v541 = vsub.f32 %v423, %v498
        %v542 = vsub.f32 %v425, %v498
        %v543 = vsub.f32 %v429, %v501
        %v544 = vsub.f32 %v431, %v501
        %v545 = vsub.f32 %v433, %v504
        %v546 = vsub.f32 %v435, %v504
        %v547 = vsub.f32 %v439, %v507
        %v548 = vsub.f32 %v441, %v507
        %v549 = vsub.f32 %v443, %v510
        %v550 = vsub.f32 %v445, %v510
        %v551 = vsub.f32 %v449, %v513
        %v552 = vsub.f32 %v451, %v513
        %v553 = vsub.f32 %v453, %v516
        %v554 = vsub.f32 %v455, %v516
        %v555 = vsub.f32 %v459, %v519
        %v556 = vsub.f32 %v461, %v519
        %v557 = vsub.f32 %v463, %v522
        %v558 = vsub.f32 %v465, %v522
        %v559 = vsub.f32 %v469, %v525
        %v560 = vsub.f32 %v471, %v525
        %v561 = vsub.f32 %v473, %v528
        %v562 = vsub.f32 %v475, %v528
        %v563 = vsub.f32 %v479, %v531
        %v564 = vsub.f32 %v481, %v531
        %v565 = vsub.f32 %v483, %v534
        %v566 = vsub.f32 %v485, %v534
        %v567 = vmul.f32 %v535, 1.442695
        %v568 = vpow.pop %v567
        %v569 = vmul.f32 %v536, 1.442695
        %v570 = vpow.pop %v569
        %v571 = vmul.f32 %v537, 1.442695
        %v572 = vpow.pop %v571
        %v573 = vmul.f32 %v538, 1.442695
        %v574 = vpow.pop %v573
        %v575 = vmul.f32 %v539, 1.442695
        %v576 = vpow.pop %v575
        %v577 = vmul.f32 %v540, 1.442695
        %v578 = vpow.pop %v577
        %v579 = vmul.f32 %v541, 1.442695
        %v580 = vpow.pop %v579
        %v581 = vmul.f32 %v542, 1.442695
        %v582 = vpow.pop %v581
        %v583 = vmul.f32 %v543, 1.442695
        %v584 = vpow.pop %v583
        %v585 = vmul.f32 %v544, 1.442695
        %v586 = vpow.pop %v585
        %v587 = vmul.f32 %v545, 1.442695
        %v588 = vpow.pop %v587
        %v589 = vmul.f32 %v546, 1.442695
        %v590 = vpow.pop %v589
        %v591 = vmul.f32 %v547, 1.442695
        %v592 = vpow.pop %v591
        %v593 = vmul.f32 %v548, 1.442695
        %v594 = vpow.pop %v593
        %v595 = vmul.f32 %v549, 1.442695
        %v596 = vpow.pop %v595
        %v597 = vmul.f32 %v550, 1.442695
        %v598 = vpow.pop %v597
        %v599 = vmul.f32 %v551, 1.442695
        %v600 = vpow.pop %v599
        %v601 = vmul.f32 %v552, 1.442695
        %v602 = vpow.pop %v601
        %v603 = vmul.f32 %v553, 1.442695
        %v604 = vpow.pop %v603
        %v605 = vmul.f32 %v554, 1.442695
        %v606 = vpow.pop %v605
        %v607 = vmul.f32 %v555, 1.442695
        %v608 = vpow.pop %v607
        %v609 = vmul.f32 %v556, 1.442695
        %v610 = vpow.pop %v609
        %v611 = vmul.f32 %v557, 1.442695
        %v612 = vpow.pop %v611
        %v613 = vmul.f32 %v558, 1.442695
        %v614 = vpow.pop %v613
        %v615 = vmul.f32 %v559, 1.442695
        %v616 = vpow.pop %v615
        %v617 = vmul.f32 %v560, 1.442695
        %v618 = vpow.pop %v617
        %v619 = vmul.f32 %v561, 1.442695
        %v620 = vpow.pop %v619
        %v621 = vmul.f32 %v562, 1.442695
        %v622 = vpow.pop %v621
        %v623 = vmul.f32 %v563, 1.442695
        %v624 = vpow.pop %v623
        %v625 = vmul.f32 %v564, 1.442695
        %v626 = vpow.pop %v625
        %v627 = vmul.f32 %v565, 1.442695
        %v628 = vpow.pop %v627
        %v629 = vmul.f32 %v566, 1.442695
        %v630 = vpow.pop %v629
        %v631 = vadd.f32 %v568, %v570
        %632 = vadd.xlane.f32.xlu0 %v631
        %v633 = vpop.xlane.xlu0 %632
        %v634 = vadd.f32 %v572, %v574
        %635 = vadd.xlane.f32.xlu0 %v634
        %v636 = vpop.xlane.xlu0 %635
        %v637 = vadd.f32 %v576, %v578
        %638 = vadd.xlane.f32.xlu0 %v637
        %v639 = vpop.xlane.xlu0 %638
        %v640 = vadd.f32 %v580, %v582
        %641 = vadd.xlane.f32.xlu0 %v640
        %v642 = vpop.xlane.xlu0 %641
        %v643 = vadd.f32 %v584, %v586
        %644 = vadd.xlane.f32.xlu0 %v643
        %v645 = vpop.xlane.xlu0 %644
        %v646 = vadd.f32 %v588, %v590
        %647 = vadd.xlane.f32.xlu0 %v646
        %v648 = vpop.xlane.xlu0 %647
        %v649 = vadd.f32 %v592, %v594
        %650 = vadd.xlane.f32.xlu0 %v649
        %v651 = vpop.xlane.xlu0 %650
        %v652 = vadd.f32 %v596, %v598
        %653 = vadd.xlane.f32.xlu0 %v652
        %v654 = vpop.xlane.xlu0 %653
        %v655 = vadd.f32 %v600, %v602
        %656 = vadd.xlane.f32.xlu0 %v655
        %v657 = vpop.xlane.xlu0 %656
        %v658 = vadd.f32 %v604, %v606
        %659 = vadd.xlane.f32.xlu0 %v658
        %v660 = vpop.xlane.xlu0 %659
        %v661 = vadd.f32 %v608, %v610
        %662 = vadd.xlane.f32.xlu0 %v661
        %v663 = vpop.xlane.xlu0 %662
        %v664 = vadd.f32 %v612, %v614
        %665 = vadd.xlane.f32.xlu0 %v664
        %v666 = vpop.xlane.xlu0 %665
        %v667 = vadd.f32 %v616, %v618
        %668 = vadd.xlane.f32.xlu0 %v667
        %v669 = vpop.xlane.xlu0 %668
        %v670 = vadd.f32 %v620, %v622
        %671 = vadd.xlane.f32.xlu0 %v670
        %v672 = vpop.xlane.xlu0 %671
        %v673 = vadd.f32 %v624, %v626
        %674 = vadd.xlane.f32.xlu0 %v673
        %v675 = vpop.xlane.xlu0 %674
        %v676 = vadd.f32 %v628, %v630
        %677 = vadd.xlane.f32.xlu0 %v676
        %v678 = vpop.xlane.xlu0 %677
        %v679 = vrcp.pop %v633
        %v680 = vrcp.pop %v636
        %v681 = vrcp.pop %v639
        %v682 = vrcp.pop %v642
        %v683 = vrcp.pop %v645
        %v684 = vrcp.pop %v648
        %v685 = vrcp.pop %v651
        %v686 = vrcp.pop %v654
        %v687 = vrcp.pop %v657
        %v688 = vrcp.pop %v660
        %v689 = vrcp.pop %v663
        %v690 = vrcp.pop %v666
        %v691 = vrcp.pop %v669
        %v692 = vrcp.pop %v672
        %v693 = vrcp.pop %v675
        %v694 = vrcp.pop %v678
        %v695 = vmul.f32 %v568, %v679
        %v696 = vmul.f32 %v570, %v679
        %v697 = vmul.f32 %v572, %v680
        %v698 = vmul.f32 %v574, %v680
        %v699 = vmul.f32 %v576, %v681
        %v700 = vmul.f32 %v578, %v681
        %v701 = vmul.f32 %v580, %v682
        %v702 = vmul.f32 %v582, %v682
        %v703 = vmul.f32 %v584, %v683
        %v704 = vmul.f32 %v586, %v683
        %v705 = vmul.f32 %v588, %v684
        %v706 = vmul.f32 %v590, %v684
        %v707 = vmul.f32 %v592, %v685
        %v708 = vmul.f32 %v594, %v685
        %v709 = vmul.f32 %v596, %v686
        %v710 = vmul.f32 %v598, %v686
        %v711 = vmul.f32 %v600, %v687
        %v712 = vmul.f32 %v602, %v687
        %v713 = vmul.f32 %v604, %v688
        %v714 = vmul.f32 %v606, %v688
        %v715 = vmul.f32 %v608, %v689
        %v716 = vmul.f32 %v610, %v689
        %v717 = vmul.f32 %v612, %v690
        %v718 = vmul.f32 %v614, %v690
        %v719 = vmul.f32 %v616, %v691
        %v720 = vmul.f32 %v618, %v691
        %v721 = vmul.f32 %v620, %v692
        %v722 = vmul.f32 %v622, %v692
        %v723 = vmul.f32 %v624, %v693
        %v724 = vmul.f32 %v626, %v693
        %v725 = vmul.f32 %v628, %v694
        %v726 = vmul.f32 %v630, %v694
        %727 = vst [vmem:[%s245] sm:$0xff] %v695
        %728 = vst [vmem:[%s245 + $0x8] sm:$0xff] %v696
        %729 = vst [vmem:[%s245 + $0x10] sm:$0xff] %v697
        %730 = vst [vmem:[%s245 + $0x18] sm:$0xff] %v698
        %731 = vst [vmem:[%s245 + $0x20] sm:$0xff] %v699
        %732 = vst [vmem:[%s245 + $0x28] sm:$0xff] %v700
        %733 = vst [vmem:[%s245 + $0x30] sm:$0xff] %v701
        %734 = vst [vmem:[%s245 + $0x38] sm:$0xff] %v702
        %735 = vst [vmem:[%s245 + $0x40] sm:$0xff] %v703
        %736 = vst [vmem:[%s245 + $0x48] sm:$0xff] %v704
        %737 = vst [vmem:[%s245 + $0x50] sm:$0xff] %v705
        %738 = vst [vmem:[%s245 + $0x58] sm:$0xff] %v706
        %739 = vst [vmem:[%s245 + $0x60] sm:$0xff] %v707
        %740 = vst [vmem:[%s245 + $0x68] sm:$0xff] %v708
        %741 = vst [vmem:[%s245 + $0x70] sm:$0xff] %v709
        %742 = vst [vmem:[%s245 + $0x78] sm:$0xff] %v710
        %743 = vst [vmem:[%s245 + $0x80] sm:$0xff] %v711
        %744 = vst [vmem:[%s245 + $0x88] sm:$0xff] %v712
        %745 = vst [vmem:[%s245 + $0x90] sm:$0xff] %v713
        %746 = vst [vmem:[%s245 + $0x98] sm:$0xff] %v714
        %747 = vst [vmem:[%s245 + $0xa0] sm:$0xff] %v715
        %748 = vst [vmem:[%s245 + $0xa8] sm:$0xff] %v716
        %749 = vst [vmem:[%s245 + $0xb0] sm:$0xff] %v717
        %750 = vst [vmem:[%s245 + $0xb8] sm:$0xff] %v718
        %751 = vst [vmem:[%s245 + $0xc0] sm:$0xff] %v719
        %752 = vst [vmem:[%s245 + $0xc8] sm:$0xff] %v720
        %753 = vst [vmem:[%s245 + $0xd0] sm:$0xff] %v721
        %754 = vst [vmem:[%s245 + $0xd8] sm:$0xff] %v722
        %755 = vst [vmem:[%s245 + $0xe0] sm:$0xff] %v723
        %756 = vst [vmem:[%s245 + $0xe8] sm:$0xff] %v724
        %757 = vst [vmem:[%s245 + $0xf0] sm:$0xff] %v725
        %758 = vst [vmem:[%s245 + $0xf8] sm:$0xff] %v726
        %s759 = sand.u32 %s92, 1
        %s760 = scalar_lea.sflag [#allocation4], %s759
        %s761 = sand.u32 %s92, 1
        %s762 = smul.addr %s761, 256
        %s763 = scalar_lea.vmem [#allocation3], %s762
        // Predicated region
        $region70: #{attention_forward.3} parent=64 // pred_check
          %p764 = pneg %p102
        $region71: #{attention_forward.3} parent=64 // pred_check_branch
          %766 = sbr.rel (%p764) target = $region73
        $region72: #{attention_forward.3} parent=64 // pred_region
          %s767 = smul.u32 16, %s21
          %s769 = ssub.s32 4096, 4096
          %770 = vsyncadd %s760, %s769
          %s771 = smul.addr %s767, 2
          %s772 = smul.addr %s20, 64
          %s773 = sadd.s32 %s771, %s772
          %s774 = smul.addr %s773, 128
          %s775 = scalar_lea.hbm %s2, %s774
          %s776 = sshll.u32 %s763, 4
          %s777 = int_to_ptr.vmem [resolvable:$true] %s776
          %782 = dma.vmem_to_hbm [thread:$0]  %s777, 4096, %s775, %s760, 256, 256, 16
        $region73: #{attention_forward.3} parent=64 // pred_fallthru
          _
      $region65: #{attention_forward.3} parent=5 // pred_fallthru
        _
      %p783 = scmp.le.s32.totalorder 2, %s11
      // Predicated region
      $region74: #{attention_forward.3} parent=5 // pred_check
        %p784 = pneg %p783
      $region75: #{attention_forward.3} parent=5 // pred_check_branch
        %786 = sbr.rel (%p784) target = $region77
      $region76: #{attention_forward.3} parent=5 // pred_region
        %s787 = ssub.s32 %s11, 2
        // Predicated region
        $region78: #{attention_forward.3} parent=76 // pred_check
          %p788 = pneg %p108
        $region79: #{attention_forward.3} parent=76 // pred_check_branch
          %790 = sbr.rel (%p788) target = $region81
        $region80: #{attention_forward.3} parent=76 // pred_region
          %s791 = sand.u32 %s93, 1
          %s792 = scalar_lea.sflag [#allocation4], %s791
          %s793 = sand.u32 %s93, 1
          %s794 = smul.addr %s793, 256
          %s795 = scalar_lea.vmem [#allocation3], %s794
          %796 = dma.done %s792, 4096
        $region81: #{attention_forward.3} parent=76 // pred_fallthru
          _
      $region77: #{attention_forward.3} parent=5 // pred_fallthru
        _
    $region6: #{attention_forward.3} parent=1 // loop_footer
      %s15 = sadd.s32 1, %s11
    $region7: #{attention_forward.3} parent=1 // loop_footer_branch
      %10 = sbr.rel target = $region3
    $region8: #{attention_forward.3} parent=1 // loop_exit
      _
    %797 = vsyncpa [#allocation4], 1
    %s798 = scalar_lea.sflag [#allocation4], 1
    %799 = vsyncpa %s798, 1

</llo_original>
